<compile_context>
chip_gen: v6e
topology: v6e:2x2x1
jax: 0.10.0
libtpu: 0.0.40
codegen_flags: <defaults>
</compile_context>

<pallas_src>
import jax
import jax.numpy as jnp
from jax.experimental import pallas as pl
from jax.experimental.pallas import tpu as pltpu


def qst_encoder_kernel(q_ref,    # (S, TB, E)        time-major input block
                       w_ref,    # (E+3H+2, 4H)      [Wih0; Whh0; Wih1; Whh1; b0; b1]
                       fc_ref,   # (4H+1, embed)     [fc_w^T; fc_b]
                       out_ref,  # (TB, embed)
                       pre_ref): # (S*TB, 4H) scratch: precomputed layer-0 input gates
    S, TB, E = q_ref.shape
    H4 = w_ref.shape[1]
    H = H4 // 4

    # Static (sublane-aligned) slices of the packed weight slab.
    wih0 = w_ref[0:E, :]                              # (E, 4H)
    whh0 = w_ref[E:E + H, :]                          # (H, 4H)
    w1 = w_ref[E + H:E + 3 * H, :]                    # (2H, 4H) == [Wih1; Whh1]
    b0 = w_ref[E + 3 * H:E + 3 * H + 1, :]            # (1, 4H)  (b_ih0 + b_hh0)
    b1 = w_ref[E + 3 * H + 1:E + 3 * H + 2, :]        # (1, 4H)  (b_ih1 + b_hh1)

    # Precompute tanh(x) and the layer-0 input projection (+bias) for ALL
    # timesteps in a single matmul, off the serial recurrent path.
    xf = jnp.tanh(q_ref[...].reshape(S * TB, E))                       # (S*TB, E)
    pre_ref[...] = jnp.dot(xf, wih0, preferred_element_type=jnp.float32) + b0

    # Hoisted bias broadcast (JAX does not CSE broadcast_in_dim inside loops).
    b1b = jnp.broadcast_to(b1, (TB, H4))

    def activate(gates):
        # Full-vreg sigmoid + tanh (2 EUP pushes) instead of 4 narrow slices.
        sig = jax.nn.sigmoid(gates)
        th = jnp.tanh(gates)
        i = sig[:, 0 * H:1 * H]
        f = sig[:, 1 * H:2 * H]
        g = th[:, 2 * H:3 * H]
        o = sig[:, 3 * H:4 * H]
        return i, f, g, o

    def body(t, carry):
        h0, c0, h1, c1 = carry

        # Layer 0: only the recurrent matmul remains in the loop.
        start = pl.multiple_of(t * TB, TB)
        g0 = pre_ref[pl.ds(start, TB), :] + jnp.dot(
            h0, whh0, preferred_element_type=jnp.float32)
        i0, f0, gg0, o0 = activate(g0)
        c0 = f0 * c0 + i0 * gg0
        h0 = o0 * jnp.tanh(c0)

        # Layer 1: single fused matmul [x_t, h] @ [Wih1; Whh1].
        xh = jnp.concatenate([h0, h1], axis=1)                          # (TB, 2H)
        g1 = jnp.dot(xh, w1, preferred_element_type=jnp.float32) + b1b
        i1, f1, gg1, o1 = activate(g1)
        c1 = f1 * c1 + i1 * gg1
        h1 = o1 * jnp.tanh(c1)

        return (h0, c0, h1, c1)

    zeros = jnp.zeros((TB, H), jnp.float32)
    h0, c0, h1, c1 = jax.lax.fori_loop(
        0, S, body, (zeros, zeros, zeros, zeros), unroll=True)

    # cat((hidden, cell), 2).transpose(0,1).reshape(B,-1) -> [h0, c0, h1, c1]
    feat = jnp.tanh(jnp.concatenate([h0, c0, h1, c1], axis=1))          # (TB, 4H)
    fcw = fc_ref[0:H4, :]                                               # (4H, embed)
    fcb = fc_ref[H4:H4 + 1, :]                                          # (1, embed)
    out_ref[...] = jnp.dot(feat, fcw, preferred_element_type=jnp.float32) + fcb


def make_params(key, word_embed_size, embed_size, num_layers, hidden_size):
    assert num_layers == 2, "kernel is specialized to num_layers=2"
    H = hidden_size
    ks = jax.random.split(key, 10)
    s = 0.1
    p = {
        # PyTorch LSTM stores weight_ih_l{l}: (4H, in), weight_hh_l{l}: (4H, H)
        "w_ih0": jax.random.normal(ks[0], (4 * H, word_embed_size), jnp.float32) * s,
        "w_hh0": jax.random.normal(ks[1], (4 * H, H), jnp.float32) * s,
        "b_ih0": jax.random.normal(ks[2], (4 * H,), jnp.float32) * s,
        "b_hh0": jax.random.normal(ks[3], (4 * H,), jnp.float32) * s,
        "w_ih1": jax.random.normal(ks[4], (4 * H, H), jnp.float32) * s,
        "w_hh1": jax.random.normal(ks[5], (4 * H, H), jnp.float32) * s,
        "b_ih1": jax.random.normal(ks[6], (4 * H,), jnp.float32) * s,
        "b_hh1": jax.random.normal(ks[7], (4 * H,), jnp.float32) * s,
        # nn.Linear(2*num_layers*H, embed): weight (embed, 2*num_layers*H), bias (embed,)
        "fc_w": jax.random.normal(ks[8], (embed_size, 2 * num_layers * H), jnp.float32) * s,
        "fc_b": jax.random.normal(ks[9], (embed_size,), jnp.float32) * s,
    }
    return p


def qst_encoder(qst_vec, params, embed_size, block_b=None):
    """qst_vec: (B, S, word_embed) float32 -> (B, embed_size) float32."""
    B, S, E = qst_vec.shape
    H = params["w_hh0"].shape[1]
    H4 = 4 * H

    q_tm = jnp.transpose(qst_vec, (1, 0, 2))                 # (S, B, E) time-major

    # Packed LSTM slab (pre-transposed for row-major matmuls, biases fused):
    # rows = [Wih0^T (E) ; Whh0^T (H) ; Wih1^T (H) ; Whh1^T (H) ; b0 (1) ; b1 (1)]
    w_slab = jnp.concatenate([
        params["w_ih0"].T,                                    # (E, 4H)
        params["w_hh0"].T,                                    # (H, 4H)
        params["w_ih1"].T,                                    # (H, 4H)
        params["w_hh1"].T,                                    # (H, 4H)
        (params["b_ih0"] + params["b_hh0"])[None, :],         # (1, 4H)
        (params["b_ih1"] + params["b_hh1"])[None, :],         # (1, 4H)
    ], axis=0).astype(jnp.float32)                            # (E+3H+2, 4H)

    # Packed fc slab: rows = [fc_w^T (4H) ; fc_b (1)]
    fc_slab = jnp.concatenate(
        [params["fc_w"].T, params["fc_b"][None, :]], axis=0
    ).astype(jnp.float32)                                     # (4H+1, embed)

    # Batch grid (single step at the demo batch; tiles of 128 at production B).
    if block_b is None:
        block_b = B if B <= 128 else 128
    assert B % block_b == 0, "batch must be divisible by block_b"
    grid = (B // block_b,)

    return pl.pallas_call(
        qst_encoder_kernel,
        out_shape=jax.ShapeDtypeStruct((B, embed_size), jnp.float32),
        grid_spec=pltpu.PrefetchScalarGridSpec(
            num_scalar_prefetch=0,
            grid=grid,
            in_specs=[
                pl.BlockSpec((S, block_b, E), lambda i: (0, i, 0)),
                pl.BlockSpec(w_slab.shape, lambda i: (0, 0)),
                pl.BlockSpec(fc_slab.shape, lambda i: (0, 0)),
            ],
            out_specs=pl.BlockSpec((block_b, embed_size), lambda i: (i, 0)),
            scratch_shapes=[pltpu.VMEM((S * block_b, H4), jnp.float32)],
        ),
        compiler_params=pltpu.CompilerParams(
            dimension_semantics=("parallel",)),
    )(q_tm, w_slab, fc_slab)


def qst_encoder_reference(qst_vec, params, embed_size):
    """Pure-JAX mirror of the PyTorch forward, for verification."""
    B, S, E = qst_vec.shape
    H = params["w_hh0"].shape[1]
    x = jnp.tanh(qst_vec)                                # (B, S, E)
    x = jnp.transpose(x, (1, 0, 2))                      # (S, B, E)

    def cell(x_t, h, c, w_ih, w_hh, b_ih, b_hh):
        g = x_t @ w_ih.T + b_ih + h @ w_hh.T + b_hh
        i = jax.nn.sigmoid(g[:, 0 * H:1 * H])
        f = jax.nn.sigmoid(g[:, 1 * H:2 * H])
        gg = jnp.tanh(g[:, 2 * H:3 * H])
        o = jax.nn.sigmoid(g[:, 3 * H:4 * H])
        c = f * c + i * gg
        h = o * jnp.tanh(c)
        return h, c

    h0 = c0 = h1 = c1 = jnp.zeros((B, H), jnp.float32)
    for t in range(S):
        h0, c0 = cell(x[t], h0, c0, params["w_ih0"], params["w_hh0"],
                      params["b_ih0"], params["b_hh0"])
        h1, c1 = cell(h0, h1, c1, params["w_ih1"], params["w_hh1"],
                      params["b_ih1"], params["b_hh1"])
    hidden = jnp.stack([h0, h1], axis=0)                 # (L, B, H)
    cellst = jnp.stack([c0, c1], axis=0)                 # (L, B, H)
    feat = jnp.concatenate([hidden, cellst], axis=2)     # (L, B, 2H)
    feat = jnp.transpose(feat, (1, 0, 2)).reshape(B, -1) # (B, 2*L*H)
    feat = jnp.tanh(feat)
    return feat @ params["fc_w"].T + params["fc_b"]


if __name__ == "__main__":
    # Small shapes consistent with the module:
    batch, seq = 2, 8
    word_embed_size, embed_size, num_layers, hidden_size = 16, 32, 2, 32

    key = jax.random.PRNGKey(0)
    k_x, k_p = jax.random.split(key)
    qst_vec = jax.random.normal(k_x, (batch, seq, word_embed_size), jnp.float32)
    params = make_params(k_p, word_embed_size, embed_size, num_layers, hidden_size)

    out = qst_encoder(qst_vec, params, embed_size)
    out = jax.block_until_ready(out)

    ref = qst_encoder_reference(qst_vec, params, embed_size)
    assert out.shape == (batch, embed_size)
    assert jnp.allclose(out, ref, atol=1e-4, rtol=1e-4), "mismatch vs JAX reference"

    print("KERNEL_OK")
</pallas_src>

<mosaic_0001>
module attributes {stable_mosaic.version = 11 : i64} {
  func.func @qst_encoder_kernel(%arg0: i32, %arg1: memref<8x2x16xf32, #tpu.memory_space<vmem>>, %arg2: memref<114x128xf32, #tpu.memory_space<vmem>>, %arg3: memref<129x32xf32, #tpu.memory_space<vmem>>, %arg4: memref<2x32xf32, #tpu.memory_space<vmem>>, %arg5: memref<16x128xf32, #tpu.memory_space<vmem>>) attributes {dimension_semantics = [#tpu.dimension_semantics<parallel>], iteration_bounds = array<i64: 1>, scalar_prefetch = 0 : i64, scratch_operands = 1 : i64, tpu.core_type = #tpu.core_type<tc>, window_params = [{transform_indices = @transform_0, window_bounds = array<i64: 8, 2, 16>}, {pipeline_mode = #tpu.pipeline_mode<synchronous>, transform_indices = @transform_1, window_bounds = array<i64: 114, 128>}, {pipeline_mode = #tpu.pipeline_mode<synchronous>, transform_indices = @transform_2, window_bounds = array<i64: 129, 32>}, {transform_indices = @transform_3, window_bounds = array<i64: 2, 32>}]} {
    %c0 = arith.constant 0 : index
    %c0_0 = arith.constant 0 : index
    %0 = vector.load %arg2[%c0, %c0_0] : memref<114x128xf32, #tpu.memory_space<vmem>>, vector<16x128xf32>
    %c16 = arith.constant 16 : index
    %c0_1 = arith.constant 0 : index
    %1 = vector.load %arg2[%c16, %c0_1] : memref<114x128xf32, #tpu.memory_space<vmem>>, vector<32x128xf32>
    %c48 = arith.constant 48 : index
    %c0_2 = arith.constant 0 : index
    %2 = vector.load %arg2[%c48, %c0_2] : memref<114x128xf32, #tpu.memory_space<vmem>>, vector<64x128xf32>
    %c112 = arith.constant 112 : index
    %c0_3 = arith.constant 0 : index
    %3 = vector.load %arg2[%c112, %c0_3] : memref<114x128xf32, #tpu.memory_space<vmem>>, vector<1x128xf32>
    %c113 = arith.constant 113 : index
    %c0_4 = arith.constant 0 : index
    %4 = vector.load %arg2[%c113, %c0_4] : memref<114x128xf32, #tpu.memory_space<vmem>>, vector<1x128xf32>
    %c0_5 = arith.constant 0 : index
    %c0_6 = arith.constant 0 : index
    %c0_7 = arith.constant 0 : index
    %5 = vector.load %arg1[%c0_5, %c0_6, %c0_7] : memref<8x2x16xf32, #tpu.memory_space<vmem>>, vector<8x2x16xf32>
    %6 = vector.shape_cast %5 : vector<8x2x16xf32> to vector<16x16xf32>
    %7 = math.tanh %6 : vector<16x16xf32>
    %cst = arith.constant dense<0.000000e+00> : vector<16x128xf32>
    %8 = tpu.matmul %7, %0, %cst {dimension_numbers = #tpu.dot_dimension_numbers<[1], [0], [0], [1], [0, 0, 1, 1], [], []>} : vector<16x16xf32>, vector<16x128xf32>, vector<16x128xf32> -> vector<16x128xf32>
    %9 = vector.broadcast %3 : vector<1x128xf32> to vector<16x128xf32>
    %10 = arith.addf %8, %9 : vector<16x128xf32>
    %c0_8 = arith.constant 0 : index
    %c0_9 = arith.constant 0 : index
    %11 = vector.load %arg5[%c0_8, %c0_9] : memref<16x128xf32, #tpu.memory_space<vmem>>, vector<16x128xf32>
    tpu.vector_store %arg5[%c0_8, %c0_9], %10 {strides = array<i32>} : memref<16x128xf32, #tpu.memory_space<vmem>>, vector<16x128xf32>,
    %12 = vector.shape_cast %4 : vector<1x128xf32> to vector<1x128xf32>
    %13 = vector.broadcast %12 : vector<1x128xf32> to vector<2x128xf32>
    %cst_10 = arith.constant 0.000000e+00 : f32
    %14 = vector.broadcast %cst_10 : f32 to vector<2x32xf32>
    %c0_i32 = arith.constant 0 : i32
    %c2_i32 = arith.constant 2 : i32
    %15 = arith.muli %c0_i32, %c2_i32 : i32
    %16 = tpu.assume_multiple %15, 2 : i32
    %17 = arith.index_cast %16 : i32 to index
    %c0_11 = arith.constant 0 : index
    %18 = vector.load %arg5[%17, %c0_11] : memref<16x128xf32, #tpu.memory_space<vmem>>, vector<2x128xf32>
    %cst_12 = arith.constant dense<0.000000e+00> : vector<2x128xf32>
    %19 = tpu.matmul %14, %1, %cst_12 {dimension_numbers = #tpu.dot_dimension_numbers<[1], [0], [0], [1], [0, 0, 1, 1], [], []>} : vector<2x32xf32>, vector<32x128xf32>, vector<2x128xf32> -> vector<2x128xf32>
    %20 = arith.addf %18, %19 : vector<2x128xf32>
    %21 = arith.negf %20 : vector<2x128xf32>
    %22 = math.exp %21 : vector<2x128xf32>
    %cst_13 = arith.constant 1.000000e+00 : f32
    %23 = vector.broadcast %cst_13 : f32 to vector<2x128xf32>
    %24 = arith.addf %23, %22 : vector<2x128xf32>
    %25 = arith.divf %23, %24 : vector<2x128xf32>
    %26 = math.tanh %20 : vector<2x128xf32>
    %27 = vector.extract_strided_slice %25 {offsets = [0, 0], sizes = [2, 32], strides = [1, 1]} : vector<2x128xf32> to vector<2x32xf32>
    %28 = vector.extract_strided_slice %25 {offsets = [0, 32], sizes = [2, 32], strides = [1, 1]} : vector<2x128xf32> to vector<2x32xf32>
    %29 = vector.extract_strided_slice %26 {offsets = [0, 64], sizes = [2, 32], strides = [1, 1]} : vector<2x128xf32> to vector<2x32xf32>
    %30 = vector.extract_strided_slice %25 {offsets = [0, 96], sizes = [2, 32], strides = [1, 1]} : vector<2x128xf32> to vector<2x32xf32>
    %31 = arith.mulf %28, %14 : vector<2x32xf32>
    %32 = arith.mulf %27, %29 : vector<2x32xf32>
    %33 = arith.addf %31, %32 : vector<2x32xf32>
    %34 = math.tanh %33 : vector<2x32xf32>
    %35 = arith.mulf %30, %34 : vector<2x32xf32>
    %36 = tpu.concatenate %35, %14 in 1 : vector<2x32xf32>, vector<2x32xf32> -> vector<2x64xf32>
    %cst_14 = arith.constant dense<0.000000e+00> : vector<2x128xf32>
    %37 = tpu.matmul %36, %2, %cst_14 {dimension_numbers = #tpu.dot_dimension_numbers<[1], [0], [0], [1], [0, 0, 1, 1], [], []>} : vector<2x64xf32>, vector<64x128xf32>, vector<2x128xf32> -> vector<2x128xf32>
    %38 = arith.addf %37, %13 : vector<2x128xf32>
    %39 = arith.negf %38 : vector<2x128xf32>
    %40 = math.exp %39 : vector<2x128xf32>
    %cst_15 = arith.constant 1.000000e+00 : f32
    %41 = vector.broadcast %cst_15 : f32 to vector<2x128xf32>
    %42 = arith.addf %41, %40 : vector<2x128xf32>
    %43 = arith.divf %41, %42 : vector<2x128xf32>
    %44 = math.tanh %38 : vector<2x128xf32>
    %45 = vector.extract_strided_slice %43 {offsets = [0, 0], sizes = [2, 32], strides = [1, 1]} : vector<2x128xf32> to vector<2x32xf32>
    %46 = vector.extract_strided_slice %43 {offsets = [0, 32], sizes = [2, 32], strides = [1, 1]} : vector<2x128xf32> to vector<2x32xf32>
    %47 = vector.extract_strided_slice %44 {offsets = [0, 64], sizes = [2, 32], strides = [1, 1]} : vector<2x128xf32> to vector<2x32xf32>
    %48 = vector.extract_strided_slice %43 {offsets = [0, 96], sizes = [2, 32], strides = [1, 1]} : vector<2x128xf32> to vector<2x32xf32>
    %49 = arith.mulf %46, %14 : vector<2x32xf32>
    %50 = arith.mulf %45, %47 : vector<2x32xf32>
    %51 = arith.addf %49, %50 : vector<2x32xf32>
    %52 = math.tanh %51 : vector<2x32xf32>
    %53 = arith.mulf %48, %52 : vector<2x32xf32>
    %c1_i32 = arith.constant 1 : i32
    %c2_i32_16 = arith.constant 2 : i32
    %54 = arith.muli %c1_i32, %c2_i32_16 : i32
    %55 = tpu.assume_multiple %54, 2 : i32
    %56 = arith.index_cast %55 : i32 to index
    %c0_17 = arith.constant 0 : index
    %57 = vector.load %arg5[%56, %c0_17] : memref<16x128xf32, #tpu.memory_space<vmem>>, vector<2x128xf32>
    %cst_18 = arith.constant dense<0.000000e+00> : vector<2x128xf32>
    %58 = tpu.matmul %35, %1, %cst_18 {dimension_numbers = #tpu.dot_dimension_numbers<[1], [0], [0], [1], [0, 0, 1, 1], [], []>} : vector<2x32xf32>, vector<32x128xf32>, vector<2x128xf32> -> vector<2x128xf32>
    %59 = arith.addf %57, %58 : vector<2x128xf32>
    %60 = arith.negf %59 : vector<2x128xf32>
    %61 = math.exp %60 : vector<2x128xf32>
    %cst_19 = arith.constant 1.000000e+00 : f32
    %62 = vector.broadcast %cst_19 : f32 to vector<2x128xf32>
    %63 = arith.addf %62, %61 : vector<2x128xf32>
    %64 = arith.divf %62, %63 : vector<2x128xf32>
    %65 = math.tanh %59 : vector<2x128xf32>
    %66 = vector.extract_strided_slice %64 {offsets = [0, 0], sizes = [2, 32], strides = [1, 1]} : vector<2x128xf32> to vector<2x32xf32>
    %67 = vector.extract_strided_slice %64 {offsets = [0, 32], sizes = [2, 32], strides = [1, 1]} : vector<2x128xf32> to vector<2x32xf32>
    %68 = vector.extract_strided_slice %65 {offsets = [0, 64], sizes = [2, 32], strides = [1, 1]} : vector<2x128xf32> to vector<2x32xf32>
    %69 = vector.extract_strided_slice %64 {offsets = [0, 96], sizes = [2, 32], strides = [1, 1]} : vector<2x128xf32> to vector<2x32xf32>
    %70 = arith.mulf %67, %33 : vector<2x32xf32>
    %71 = arith.mulf %66, %68 : vector<2x32xf32>
    %72 = arith.addf %70, %71 : vector<2x32xf32>
    %73 = math.tanh %72 : vector<2x32xf32>
    %74 = arith.mulf %69, %73 : vector<2x32xf32>
    %75 = tpu.concatenate %74, %53 in 1 : vector<2x32xf32>, vector<2x32xf32> -> vector<2x64xf32>
    %cst_20 = arith.constant dense<0.000000e+00> : vector<2x128xf32>
    %76 = tpu.matmul %75, %2, %cst_20 {dimension_numbers = #tpu.dot_dimension_numbers<[1], [0], [0], [1], [0, 0, 1, 1], [], []>} : vector<2x64xf32>, vector<64x128xf32>, vector<2x128xf32> -> vector<2x128xf32>
    %77 = arith.addf %76, %13 : vector<2x128xf32>
    %78 = arith.negf %77 : vector<2x128xf32>
    %79 = math.exp %78 : vector<2x128xf32>
    %cst_21 = arith.constant 1.000000e+00 : f32
    %80 = vector.broadcast %cst_21 : f32 to vector<2x128xf32>
    %81 = arith.addf %80, %79 : vector<2x128xf32>
    %82 = arith.divf %80, %81 : vector<2x128xf32>
    %83 = math.tanh %77 : vector<2x128xf32>
    %84 = vector.extract_strided_slice %82 {offsets = [0, 0], sizes = [2, 32], strides = [1, 1]} : vector<2x128xf32> to vector<2x32xf32>
    %85 = vector.extract_strided_slice %82 {offsets = [0, 32], sizes = [2, 32], strides = [1, 1]} : vector<2x128xf32> to vector<2x32xf32>
    %86 = vector.extract_strided_slice %83 {offsets = [0, 64], sizes = [2, 32], strides = [1, 1]} : vector<2x128xf32> to vector<2x32xf32>
    %87 = vector.extract_strided_slice %82 {offsets = [0, 96], sizes = [2, 32], strides = [1, 1]} : vector<2x128xf32> to vector<2x32xf32>
    %88 = arith.mulf %85, %51 : vector<2x32xf32>
    %89 = arith.mulf %84, %86 : vector<2x32xf32>
    %90 = arith.addf %88, %89 : vector<2x32xf32>
    %91 = math.tanh %90 : vector<2x32xf32>
    %92 = arith.mulf %87, %91 : vector<2x32xf32>
    %c2_i32_22 = arith.constant 2 : i32
    %c2_i32_23 = arith.constant 2 : i32
    %93 = arith.muli %c2_i32_22, %c2_i32_23 : i32
    %94 = tpu.assume_multiple %93, 2 : i32
    %95 = arith.index_cast %94 : i32 to index
    %c0_24 = arith.constant 0 : index
    %96 = vector.load %arg5[%95, %c0_24] : memref<16x128xf32, #tpu.memory_space<vmem>>, vector<2x128xf32>
    %cst_25 = arith.constant dense<0.000000e+00> : vector<2x128xf32>
    %97 = tpu.matmul %74, %1, %cst_25 {dimension_numbers = #tpu.dot_dimension_numbers<[1], [0], [0], [1], [0, 0, 1, 1], [], []>} : vector<2x32xf32>, vector<32x128xf32>, vector<2x128xf32> -> vector<2x128xf32>
    %98 = arith.addf %96, %97 : vector<2x128xf32>
    %99 = arith.negf %98 : vector<2x128xf32>
    %100 = math.exp %99 : vector<2x128xf32>
    %cst_26 = arith.constant 1.000000e+00 : f32
    %101 = vector.broadcast %cst_26 : f32 to vector<2x128xf32>
    %102 = arith.addf %101, %100 : vector<2x128xf32>
    %103 = arith.divf %101, %102 : vector<2x128xf32>
    %104 = math.tanh %98 : vector<2x128xf32>
    %105 = vector.extract_strided_slice %103 {offsets = [0, 0], sizes = [2, 32], strides = [1, 1]} : vector<2x128xf32> to vector<2x32xf32>
    %106 = vector.extract_strided_slice %103 {offsets = [0, 32], sizes = [2, 32], strides = [1, 1]} : vector<2x128xf32> to vector<2x32xf32>
    %107 = vector.extract_strided_slice %104 {offsets = [0, 64], sizes = [2, 32], strides = [1, 1]} : vector<2x128xf32> to vector<2x32xf32>
    %108 = vector.extract_strided_slice %103 {offsets = [0, 96], sizes = [2, 32], strides = [1, 1]} : vector<2x128xf32> to vector<2x32xf32>
    %109 = arith.mulf %106, %72 : vector<2x32xf32>
    %110 = arith.mulf %105, %107 : vector<2x32xf32>
    %111 = arith.addf %109, %110 : vector<2x32xf32>
    %112 = math.tanh %111 : vector<2x32xf32>
    %113 = arith.mulf %108, %112 : vector<2x32xf32>
    %114 = tpu.concatenate %113, %92 in 1 : vector<2x32xf32>, vector<2x32xf32> -> vector<2x64xf32>
    %cst_27 = arith.constant dense<0.000000e+00> : vector<2x128xf32>
    %115 = tpu.matmul %114, %2, %cst_27 {dimension_numbers = #tpu.dot_dimension_numbers<[1], [0], [0], [1], [0, 0, 1, 1], [], []>} : vector<2x64xf32>, vector<64x128xf32>, vector<2x128xf32> -> vector<2x128xf32>
    %116 = arith.addf %115, %13 : vector<2x128xf32>
    %117 = arith.negf %116 : vector<2x128xf32>
    %118 = math.exp %117 : vector<2x128xf32>
    %cst_28 = arith.constant 1.000000e+00 : f32
    %119 = vector.broadcast %cst_28 : f32 to vector<2x128xf32>
    %120 = arith.addf %119, %118 : vector<2x128xf32>
    %121 = arith.divf %119, %120 : vector<2x128xf32>
    %122 = math.tanh %116 : vector<2x128xf32>
    %123 = vector.extract_strided_slice %121 {offsets = [0, 0], sizes = [2, 32], strides = [1, 1]} : vector<2x128xf32> to vector<2x32xf32>
    %124 = vector.extract_strided_slice %121 {offsets = [0, 32], sizes = [2, 32], strides = [1, 1]} : vector<2x128xf32> to vector<2x32xf32>
    %125 = vector.extract_strided_slice %122 {offsets = [0, 64], sizes = [2, 32], strides = [1, 1]} : vector<2x128xf32> to vector<2x32xf32>
    %126 = vector.extract_strided_slice %121 {offsets = [0, 96], sizes = [2, 32], strides = [1, 1]} : vector<2x128xf32> to vector<2x32xf32>
    %127 = arith.mulf %124, %90 : vector<2x32xf32>
    %128 = arith.mulf %123, %125 : vector<2x32xf32>
    %129 = arith.addf %127, %128 : vector<2x32xf32>
    %130 = math.tanh %129 : vector<2x32xf32>
    %131 = arith.mulf %126, %130 : vector<2x32xf32>
    %c3_i32 = arith.constant 3 : i32
    %c2_i32_29 = arith.constant 2 : i32
    %132 = arith.muli %c3_i32, %c2_i32_29 : i32
    %133 = tpu.assume_multiple %132, 2 : i32
    %134 = arith.index_cast %133 : i32 to index
    %c0_30 = arith.constant 0 : index
    %135 = vector.load %arg5[%134, %c0_30] : memref<16x128xf32, #tpu.memory_space<vmem>>, vector<2x128xf32>
    %cst_31 = arith.constant dense<0.000000e+00> : vector<2x128xf32>
    %136 = tpu.matmul %113, %1, %cst_31 {dimension_numbers = #tpu.dot_dimension_numbers<[1], [0], [0], [1], [0, 0, 1, 1], [], []>} : vector<2x32xf32>, vector<32x128xf32>, vector<2x128xf32> -> vector<2x128xf32>
    %137 = arith.addf %135, %136 : vector<2x128xf32>
    %138 = arith.negf %137 : vector<2x128xf32>
    %139 = math.exp %138 : vector<2x128xf32>
    %cst_32 = arith.constant 1.000000e+00 : f32
    %140 = vector.broadcast %cst_32 : f32 to vector<2x128xf32>
    %141 = arith.addf %140, %139 : vector<2x128xf32>
    %142 = arith.divf %140, %141 : vector<2x128xf32>
    %143 = math.tanh %137 : vector<2x128xf32>
    %144 = vector.extract_strided_slice %142 {offsets = [0, 0], sizes = [2, 32], strides = [1, 1]} : vector<2x128xf32> to vector<2x32xf32>
    %145 = vector.extract_strided_slice %142 {offsets = [0, 32], sizes = [2, 32], strides = [1, 1]} : vector<2x128xf32> to vector<2x32xf32>
    %146 = vector.extract_strided_slice %143 {offsets = [0, 64], sizes = [2, 32], strides = [1, 1]} : vector<2x128xf32> to vector<2x32xf32>
    %147 = vector.extract_strided_slice %142 {offsets = [0, 96], sizes = [2, 32], strides = [1, 1]} : vector<2x128xf32> to vector<2x32xf32>
    %148 = arith.mulf %145, %111 : vector<2x32xf32>
    %149 = arith.mulf %144, %146 : vector<2x32xf32>
    %150 = arith.addf %148, %149 : vector<2x32xf32>
    %151 = math.tanh %150 : vector<2x32xf32>
    %152 = arith.mulf %147, %151 : vector<2x32xf32>
    %153 = tpu.concatenate %152, %131 in 1 : vector<2x32xf32>, vector<2x32xf32> -> vector<2x64xf32>
    %cst_33 = arith.constant dense<0.000000e+00> : vector<2x128xf32>
    %154 = tpu.matmul %153, %2, %cst_33 {dimension_numbers = #tpu.dot_dimension_numbers<[1], [0], [0], [1], [0, 0, 1, 1], [], []>} : vector<2x64xf32>, vector<64x128xf32>, vector<2x128xf32> -> vector<2x128xf32>
    %155 = arith.addf %154, %13 : vector<2x128xf32>
    %156 = arith.negf %155 : vector<2x128xf32>
    %157 = math.exp %156 : vector<2x128xf32>
    %cst_34 = arith.constant 1.000000e+00 : f32
    %158 = vector.broadcast %cst_34 : f32 to vector<2x128xf32>
    %159 = arith.addf %158, %157 : vector<2x128xf32>
    %160 = arith.divf %158, %159 : vector<2x128xf32>
    %161 = math.tanh %155 : vector<2x128xf32>
    %162 = vector.extract_strided_slice %160 {offsets = [0, 0], sizes = [2, 32], strides = [1, 1]} : vector<2x128xf32> to vector<2x32xf32>
    %163 = vector.extract_strided_slice %160 {offsets = [0, 32], sizes = [2, 32], strides = [1, 1]} : vector<2x128xf32> to vector<2x32xf32>
    %164 = vector.extract_strided_slice %161 {offsets = [0, 64], sizes = [2, 32], strides = [1, 1]} : vector<2x128xf32> to vector<2x32xf32>
    %165 = vector.extract_strided_slice %160 {offsets = [0, 96], sizes = [2, 32], strides = [1, 1]} : vector<2x128xf32> to vector<2x32xf32>
    %166 = arith.mulf %163, %129 : vector<2x32xf32>
    %167 = arith.mulf %162, %164 : vector<2x32xf32>
    %168 = arith.addf %166, %167 : vector<2x32xf32>
    %169 = math.tanh %168 : vector<2x32xf32>
    %170 = arith.mulf %165, %169 : vector<2x32xf32>
    %c4_i32 = arith.constant 4 : i32
    %c2_i32_35 = arith.constant 2 : i32
    %171 = arith.muli %c4_i32, %c2_i32_35 : i32
    %172 = tpu.assume_multiple %171, 2 : i32
    %173 = arith.index_cast %172 : i32 to index
    %c0_36 = arith.constant 0 : index
    %174 = vector.load %arg5[%173, %c0_36] : memref<16x128xf32, #tpu.memory_space<vmem>>, vector<2x128xf32>
    %cst_37 = arith.constant dense<0.000000e+00> : vector<2x128xf32>
    %175 = tpu.matmul %152, %1, %cst_37 {dimension_numbers = #tpu.dot_dimension_numbers<[1], [0], [0], [1], [0, 0, 1, 1], [], []>} : vector<2x32xf32>, vector<32x128xf32>, vector<2x128xf32> -> vector<2x128xf32>
    %176 = arith.addf %174, %175 : vector<2x128xf32>
    %177 = arith.negf %176 : vector<2x128xf32>
    %178 = math.exp %177 : vector<2x128xf32>
    %cst_38 = arith.constant 1.000000e+00 : f32
    %179 = vector.broadcast %cst_38 : f32 to vector<2x128xf32>
    %180 = arith.addf %179, %178 : vector<2x128xf32>
    %181 = arith.divf %179, %180 : vector<2x128xf32>
    %182 = math.tanh %176 : vector<2x128xf32>
    %183 = vector.extract_strided_slice %181 {offsets = [0, 0], sizes = [2, 32], strides = [1, 1]} : vector<2x128xf32> to vector<2x32xf32>
    %184 = vector.extract_strided_slice %181 {offsets = [0, 32], sizes = [2, 32], strides = [1, 1]} : vector<2x128xf32> to vector<2x32xf32>
    %185 = vector.extract_strided_slice %182 {offsets = [0, 64], sizes = [2, 32], strides = [1, 1]} : vector<2x128xf32> to vector<2x32xf32>
    %186 = vector.extract_strided_slice %181 {offsets = [0, 96], sizes = [2, 32], strides = [1, 1]} : vector<2x128xf32> to vector<2x32xf32>
    %187 = arith.mulf %184, %150 : vector<2x32xf32>
    %188 = arith.mulf %183, %185 : vector<2x32xf32>
    %189 = arith.addf %187, %188 : vector<2x32xf32>
    %190 = math.tanh %189 : vector<2x32xf32>
    %191 = arith.mulf %186, %190 : vector<2x32xf32>
    %192 = tpu.concatenate %191, %170 in 1 : vector<2x32xf32>, vector<2x32xf32> -> vector<2x64xf32>
    %cst_39 = arith.constant dense<0.000000e+00> : vector<2x128xf32>
    %193 = tpu.matmul %192, %2, %cst_39 {dimension_numbers = #tpu.dot_dimension_numbers<[1], [0], [0], [1], [0, 0, 1, 1], [], []>} : vector<2x64xf32>, vector<64x128xf32>, vector<2x128xf32> -> vector<2x128xf32>
    %194 = arith.addf %193, %13 : vector<2x128xf32>
    %195 = arith.negf %194 : vector<2x128xf32>
    %196 = math.exp %195 : vector<2x128xf32>
    %cst_40 = arith.constant 1.000000e+00 : f32
    %197 = vector.broadcast %cst_40 : f32 to vector<2x128xf32>
    %198 = arith.addf %197, %196 : vector<2x128xf32>
    %199 = arith.divf %197, %198 : vector<2x128xf32>
    %200 = math.tanh %194 : vector<2x128xf32>
    %201 = vector.extract_strided_slice %199 {offsets = [0, 0], sizes = [2, 32], strides = [1, 1]} : vector<2x128xf32> to vector<2x32xf32>
    %202 = vector.extract_strided_slice %199 {offsets = [0, 32], sizes = [2, 32], strides = [1, 1]} : vector<2x128xf32> to vector<2x32xf32>
    %203 = vector.extract_strided_slice %200 {offsets = [0, 64], sizes = [2, 32], strides = [1, 1]} : vector<2x128xf32> to vector<2x32xf32>
    %204 = vector.extract_strided_slice %199 {offsets = [0, 96], sizes = [2, 32], strides = [1, 1]} : vector<2x128xf32> to vector<2x32xf32>
    %205 = arith.mulf %202, %168 : vector<2x32xf32>
    %206 = arith.mulf %201, %203 : vector<2x32xf32>
    %207 = arith.addf %205, %206 : vector<2x32xf32>
    %208 = math.tanh %207 : vector<2x32xf32>
    %209 = arith.mulf %204, %208 : vector<2x32xf32>
    %c5_i32 = arith.constant 5 : i32
    %c2_i32_41 = arith.constant 2 : i32
    %210 = arith.muli %c5_i32, %c2_i32_41 : i32
    %211 = tpu.assume_multiple %210, 2 : i32
    %212 = arith.index_cast %211 : i32 to index
    %c0_42 = arith.constant 0 : index
    %213 = vector.load %arg5[%212, %c0_42] : memref<16x128xf32, #tpu.memory_space<vmem>>, vector<2x128xf32>
    %cst_43 = arith.constant dense<0.000000e+00> : vector<2x128xf32>
    %214 = tpu.matmul %191, %1, %cst_43 {dimension_numbers = #tpu.dot_dimension_numbers<[1], [0], [0], [1], [0, 0, 1, 1], [], []>} : vector<2x32xf32>, vector<32x128xf32>, vector<2x128xf32> -> vector<2x128xf32>
    %215 = arith.addf %213, %214 : vector<2x128xf32>
    %216 = arith.negf %215 : vector<2x128xf32>
    %217 = math.exp %216 : vector<2x128xf32>
    %cst_44 = arith.constant 1.000000e+00 : f32
    %218 = vector.broadcast %cst_44 : f32 to vector<2x128xf32>
    %219 = arith.addf %218, %217 : vector<2x128xf32>
    %220 = arith.divf %218, %219 : vector<2x128xf32>
    %221 = math.tanh %215 : vector<2x128xf32>
    %222 = vector.extract_strided_slice %220 {offsets = [0, 0], sizes = [2, 32], strides = [1, 1]} : vector<2x128xf32> to vector<2x32xf32>
    %223 = vector.extract_strided_slice %220 {offsets = [0, 32], sizes = [2, 32], strides = [1, 1]} : vector<2x128xf32> to vector<2x32xf32>
    %224 = vector.extract_strided_slice %221 {offsets = [0, 64], sizes = [2, 32], strides = [1, 1]} : vector<2x128xf32> to vector<2x32xf32>
    %225 = vector.extract_strided_slice %220 {offsets = [0, 96], sizes = [2, 32], strides = [1, 1]} : vector<2x128xf32> to vector<2x32xf32>
    %226 = arith.mulf %223, %189 : vector<2x32xf32>
    %227 = arith.mulf %222, %224 : vector<2x32xf32>
    %228 = arith.addf %226, %227 : vector<2x32xf32>
    %229 = math.tanh %228 : vector<2x32xf32>
    %230 = arith.mulf %225, %229 : vector<2x32xf32>
    %231 = tpu.concatenate %230, %209 in 1 : vector<2x32xf32>, vector<2x32xf32> -> vector<2x64xf32>
    %cst_45 = arith.constant dense<0.000000e+00> : vector<2x128xf32>
    %232 = tpu.matmul %231, %2, %cst_45 {dimension_numbers = #tpu.dot_dimension_numbers<[1], [0], [0], [1], [0, 0, 1, 1], [], []>} : vector<2x64xf32>, vector<64x128xf32>, vector<2x128xf32> -> vector<2x128xf32>
    %233 = arith.addf %232, %13 : vector<2x128xf32>
    %234 = arith.negf %233 : vector<2x128xf32>
    %235 = math.exp %234 : vector<2x128xf32>
    %cst_46 = arith.constant 1.000000e+00 : f32
    %236 = vector.broadcast %cst_46 : f32 to vector<2x128xf32>
    %237 = arith.addf %236, %235 : vector<2x128xf32>
    %238 = arith.divf %236, %237 : vector<2x128xf32>
    %239 = math.tanh %233 : vector<2x128xf32>
    %240 = vector.extract_strided_slice %238 {offsets = [0, 0], sizes = [2, 32], strides = [1, 1]} : vector<2x128xf32> to vector<2x32xf32>
    %241 = vector.extract_strided_slice %238 {offsets = [0, 32], sizes = [2, 32], strides = [1, 1]} : vector<2x128xf32> to vector<2x32xf32>
    %242 = vector.extract_strided_slice %239 {offsets = [0, 64], sizes = [2, 32], strides = [1, 1]} : vector<2x128xf32> to vector<2x32xf32>
    %243 = vector.extract_strided_slice %238 {offsets = [0, 96], sizes = [2, 32], strides = [1, 1]} : vector<2x128xf32> to vector<2x32xf32>
    %244 = arith.mulf %241, %207 : vector<2x32xf32>
    %245 = arith.mulf %240, %242 : vector<2x32xf32>
    %246 = arith.addf %244, %245 : vector<2x32xf32>
    %247 = math.tanh %246 : vector<2x32xf32>
    %248 = arith.mulf %243, %247 : vector<2x32xf32>
    %c6_i32 = arith.constant 6 : i32
    %c2_i32_47 = arith.constant 2 : i32
    %249 = arith.muli %c6_i32, %c2_i32_47 : i32
    %250 = tpu.assume_multiple %249, 2 : i32
    %251 = arith.index_cast %250 : i32 to index
    %c0_48 = arith.constant 0 : index
    %252 = vector.load %arg5[%251, %c0_48] : memref<16x128xf32, #tpu.memory_space<vmem>>, vector<2x128xf32>
    %cst_49 = arith.constant dense<0.000000e+00> : vector<2x128xf32>
    %253 = tpu.matmul %230, %1, %cst_49 {dimension_numbers = #tpu.dot_dimension_numbers<[1], [0], [0], [1], [0, 0, 1, 1], [], []>} : vector<2x32xf32>, vector<32x128xf32>, vector<2x128xf32> -> vector<2x128xf32>
    %254 = arith.addf %252, %253 : vector<2x128xf32>
    %255 = arith.negf %254 : vector<2x128xf32>
    %256 = math.exp %255 : vector<2x128xf32>
    %cst_50 = arith.constant 1.000000e+00 : f32
    %257 = vector.broadcast %cst_50 : f32 to vector<2x128xf32>
    %258 = arith.addf %257, %256 : vector<2x128xf32>
    %259 = arith.divf %257, %258 : vector<2x128xf32>
    %260 = math.tanh %254 : vector<2x128xf32>
    %261 = vector.extract_strided_slice %259 {offsets = [0, 0], sizes = [2, 32], strides = [1, 1]} : vector<2x128xf32> to vector<2x32xf32>
    %262 = vector.extract_strided_slice %259 {offsets = [0, 32], sizes = [2, 32], strides = [1, 1]} : vector<2x128xf32> to vector<2x32xf32>
    %263 = vector.extract_strided_slice %260 {offsets = [0, 64], sizes = [2, 32], strides = [1, 1]} : vector<2x128xf32> to vector<2x32xf32>
    %264 = vector.extract_strided_slice %259 {offsets = [0, 96], sizes = [2, 32], strides = [1, 1]} : vector<2x128xf32> to vector<2x32xf32>
    %265 = arith.mulf %262, %228 : vector<2x32xf32>
    %266 = arith.mulf %261, %263 : vector<2x32xf32>
    %267 = arith.addf %265, %266 : vector<2x32xf32>
    %268 = math.tanh %267 : vector<2x32xf32>
    %269 = arith.mulf %264, %268 : vector<2x32xf32>
    %270 = tpu.concatenate %269, %248 in 1 : vector<2x32xf32>, vector<2x32xf32> -> vector<2x64xf32>
    %cst_51 = arith.constant dense<0.000000e+00> : vector<2x128xf32>
    %271 = tpu.matmul %270, %2, %cst_51 {dimension_numbers = #tpu.dot_dimension_numbers<[1], [0], [0], [1], [0, 0, 1, 1], [], []>} : vector<2x64xf32>, vector<64x128xf32>, vector<2x128xf32> -> vector<2x128xf32>
    %272 = arith.addf %271, %13 : vector<2x128xf32>
    %273 = arith.negf %272 : vector<2x128xf32>
    %274 = math.exp %273 : vector<2x128xf32>
    %cst_52 = arith.constant 1.000000e+00 : f32
    %275 = vector.broadcast %cst_52 : f32 to vector<2x128xf32>
    %276 = arith.addf %275, %274 : vector<2x128xf32>
    %277 = arith.divf %275, %276 : vector<2x128xf32>
    %278 = math.tanh %272 : vector<2x128xf32>
    %279 = vector.extract_strided_slice %277 {offsets = [0, 0], sizes = [2, 32], strides = [1, 1]} : vector<2x128xf32> to vector<2x32xf32>
    %280 = vector.extract_strided_slice %277 {offsets = [0, 32], sizes = [2, 32], strides = [1, 1]} : vector<2x128xf32> to vector<2x32xf32>
    %281 = vector.extract_strided_slice %278 {offsets = [0, 64], sizes = [2, 32], strides = [1, 1]} : vector<2x128xf32> to vector<2x32xf32>
    %282 = vector.extract_strided_slice %277 {offsets = [0, 96], sizes = [2, 32], strides = [1, 1]} : vector<2x128xf32> to vector<2x32xf32>
    %283 = arith.mulf %280, %246 : vector<2x32xf32>
    %284 = arith.mulf %279, %281 : vector<2x32xf32>
    %285 = arith.addf %283, %284 : vector<2x32xf32>
    %286 = math.tanh %285 : vector<2x32xf32>
    %287 = arith.mulf %282, %286 : vector<2x32xf32>
    %c7_i32 = arith.constant 7 : i32
    %c2_i32_53 = arith.constant 2 : i32
    %288 = arith.muli %c7_i32, %c2_i32_53 : i32
    %289 = tpu.assume_multiple %288, 2 : i32
    %290 = arith.index_cast %289 : i32 to index
    %c0_54 = arith.constant 0 : index
    %291 = vector.load %arg5[%290, %c0_54] : memref<16x128xf32, #tpu.memory_space<vmem>>, vector<2x128xf32>
    %cst_55 = arith.constant dense<0.000000e+00> : vector<2x128xf32>
    %292 = tpu.matmul %269, %1, %cst_55 {dimension_numbers = #tpu.dot_dimension_numbers<[1], [0], [0], [1], [0, 0, 1, 1], [], []>} : vector<2x32xf32>, vector<32x128xf32>, vector<2x128xf32> -> vector<2x128xf32>
    %293 = arith.addf %291, %292 : vector<2x128xf32>
    %294 = arith.negf %293 : vector<2x128xf32>
    %295 = math.exp %294 : vector<2x128xf32>
    %cst_56 = arith.constant 1.000000e+00 : f32
    %296 = vector.broadcast %cst_56 : f32 to vector<2x128xf32>
    %297 = arith.addf %296, %295 : vector<2x128xf32>
    %298 = arith.divf %296, %297 : vector<2x128xf32>
    %299 = math.tanh %293 : vector<2x128xf32>
    %300 = vector.extract_strided_slice %298 {offsets = [0, 0], sizes = [2, 32], strides = [1, 1]} : vector<2x128xf32> to vector<2x32xf32>
    %301 = vector.extract_strided_slice %298 {offsets = [0, 32], sizes = [2, 32], strides = [1, 1]} : vector<2x128xf32> to vector<2x32xf32>
    %302 = vector.extract_strided_slice %299 {offsets = [0, 64], sizes = [2, 32], strides = [1, 1]} : vector<2x128xf32> to vector<2x32xf32>
    %303 = vector.extract_strided_slice %298 {offsets = [0, 96], sizes = [2, 32], strides = [1, 1]} : vector<2x128xf32> to vector<2x32xf32>
    %304 = arith.mulf %301, %267 : vector<2x32xf32>
    %305 = arith.mulf %300, %302 : vector<2x32xf32>
    %306 = arith.addf %304, %305 : vector<2x32xf32>
    %307 = math.tanh %306 : vector<2x32xf32>
    %308 = arith.mulf %303, %307 : vector<2x32xf32>
    %309 = tpu.concatenate %308, %287 in 1 : vector<2x32xf32>, vector<2x32xf32> -> vector<2x64xf32>
    %cst_57 = arith.constant dense<0.000000e+00> : vector<2x128xf32>
    %310 = tpu.matmul %309, %2, %cst_57 {dimension_numbers = #tpu.dot_dimension_numbers<[1], [0], [0], [1], [0, 0, 1, 1], [], []>} : vector<2x64xf32>, vector<64x128xf32>, vector<2x128xf32> -> vector<2x128xf32>
    %311 = arith.addf %310, %13 : vector<2x128xf32>
    %312 = arith.negf %311 : vector<2x128xf32>
    %313 = math.exp %312 : vector<2x128xf32>
    %cst_58 = arith.constant 1.000000e+00 : f32
    %314 = vector.broadcast %cst_58 : f32 to vector<2x128xf32>
    %315 = arith.addf %314, %313 : vector<2x128xf32>
    %316 = arith.divf %314, %315 : vector<2x128xf32>
    %317 = math.tanh %311 : vector<2x128xf32>
    %318 = vector.extract_strided_slice %316 {offsets = [0, 0], sizes = [2, 32], strides = [1, 1]} : vector<2x128xf32> to vector<2x32xf32>
    %319 = vector.extract_strided_slice %316 {offsets = [0, 32], sizes = [2, 32], strides = [1, 1]} : vector<2x128xf32> to vector<2x32xf32>
    %320 = vector.extract_strided_slice %317 {offsets = [0, 64], sizes = [2, 32], strides = [1, 1]} : vector<2x128xf32> to vector<2x32xf32>
    %321 = vector.extract_strided_slice %316 {offsets = [0, 96], sizes = [2, 32], strides = [1, 1]} : vector<2x128xf32> to vector<2x32xf32>
    %322 = arith.mulf %319, %285 : vector<2x32xf32>
    %323 = arith.mulf %318, %320 : vector<2x32xf32>
    %324 = arith.addf %322, %323 : vector<2x32xf32>
    %325 = math.tanh %324 : vector<2x32xf32>
    %326 = arith.mulf %321, %325 : vector<2x32xf32>
    %c8_i32 = arith.constant 8 : i32
    %327 = tpu.concatenate %308, %306, %326, %324 in 1 : vector<2x32xf32>, vector<2x32xf32>, vector<2x32xf32>, vector<2x32xf32> -> vector<2x128xf32>
    %328 = math.tanh %327 : vector<2x128xf32>
    %c0_59 = arith.constant 0 : index
    %c0_60 = arith.constant 0 : index
    %329 = vector.load %arg3[%c0_59, %c0_60] : memref<129x32xf32, #tpu.memory_space<vmem>>, vector<128x32xf32>
    %c128 = arith.constant 128 : index
    %c0_61 = arith.constant 0 : index
    %330 = vector.load %arg3[%c128, %c0_61] : memref<129x32xf32, #tpu.memory_space<vmem>>, vector<1x32xf32>
    %cst_62 = arith.constant dense<0.000000e+00> : vector<2x32xf32>
    %331 = tpu.matmul %328, %329, %cst_62 {dimension_numbers = #tpu.dot_dimension_numbers<[1], [0], [0], [1], [0, 0, 1, 1], [], []>} : vector<2x128xf32>, vector<128x32xf32>, vector<2x32xf32> -> vector<2x32xf32>
    %332 = vector.broadcast %330 : vector<1x32xf32> to vector<2x32xf32>
    %333 = arith.addf %331, %332 : vector<2x32xf32>
    %c0_63 = arith.constant 0 : index
    %c0_64 = arith.constant 0 : index
    %334 = vector.load %arg4[%c0_63, %c0_64] : memref<2x32xf32, #tpu.memory_space<vmem>>, vector<2x32xf32>
    tpu.vector_store %arg4[%c0_63, %c0_64], %333 {strides = array<i32>} : memref<2x32xf32, #tpu.memory_space<vmem>>, vector<2x32xf32>,
    return
  }
  func.func @transform_0(%arg0: i32) -> (i32, i32, i32) {
    %c0_i32 = arith.constant 0 : i32
    %c0_i32_0 = arith.constant 0 : i32
    %c0_i32_1 = arith.constant 0 : i32
    return %c0_i32, %arg0, %c0_i32_0 : i32, i32, i32
  }
  func.func @transform_1(%arg0: i32) -> (i32, i32) {
    %c0_i32 = arith.constant 0 : i32
    %c0_i32_0 = arith.constant 0 : i32
    %c0_i32_1 = arith.constant 0 : i32
    return %c0_i32, %c0_i32_0 : i32, i32
  }
  func.func @transform_2(%arg0: i32) -> (i32, i32) {
    %c0_i32 = arith.constant 0 : i32
    %c0_i32_0 = arith.constant 0 : i32
    %c0_i32_1 = arith.constant 0 : i32
    return %c0_i32, %c0_i32_0 : i32, i32
  }
  func.func @transform_3(%arg0: i32) -> (i32, i32) {
    %c0_i32 = arith.constant 0 : i32
    %c0_i32_0 = arith.constant 0 : i32
    return %arg0, %c0_i32 : i32, i32
  }
}

</mosaic_0001>

<llo_original>
// kernel: tpu_custom_call.1
$region0: #{tpu_custom_call.1}
  #allocation0 [shape = 'u32[]', space=smem, size = 0x4, offset = 0x4, fixed_abs, tag = 'smem constant byte address 0x4 - core index']
  #allocation1 [shape = 'u32[144,128]{1,0:T(1,128)}', space=vmem, size = 0x12000, scoped, tag = 'internal scratch']
  #allocation2 [shape = 'f32[16,128]{1,0:T(8,128)}', space=vmem, size = 0x2000, scoped, tag = 'scratch operand']
  %s0 = inlined_call_operand.vmem [shape: f32[8,2,16], index: 0, kind: input, shape index: {}]
  %s1 = inlined_call_operand.vmem [shape: f32[114,128], index: 1, kind: input, shape index: {}]
  %s2 = inlined_call_operand.vmem [shape: f32[129,32], index: 2, kind: input, shape index: {}]
  %s3 = inlined_call_operand.hbm [shape: f32[2,32], index: 3, kind: output, shape index: {}]
  %s4 = sld [smem:[#allocation0]]
  $region22: #{tpu_custom_call.1} parent=0
    _
  %s6 = ssub.s32 1, %s4
  %s7 = scalar_select 0, %s6, %s4
  $region1: #{tpu_custom_call.1} parent=0
    #allocation3 [shape = 'u8[1024]{0}', space=vmem, size = 0x400, scoped, tag = 'output window, operand 0, single buffered']
    #allocation4 [shape = 's32[1]{0}', space=sflag, size = 0x4, scoped, tag = 'scoped memory for tpu_custom_call.1']
    %8 = vsyncpa [#allocation4], 0
    // Predicated region
    $region2: #{tpu_custom_call.1} parent=1 // pred_check
      _
    $region3: #{tpu_custom_call.1} parent=1 // pred_check_branch
      %10 = sbr.rel (0) target = $region5
    $region4: #{tpu_custom_call.1} parent=1 // pred_region
      _
    $region5: #{tpu_custom_call.1} parent=1 // pred_fallthru
      _
    // Predicated region
    $region6: #{tpu_custom_call.1} parent=1 // pred_check
      _
    $region7: #{tpu_custom_call.1} parent=1 // pred_check_branch
      %12 = sbr.rel (0) target = $region9
    $region8: #{tpu_custom_call.1} parent=1 // pred_region
      _
    $region9: #{tpu_custom_call.1} parent=1 // pred_fallthru
      _
    // Predicated region
    $region10: #{tpu_custom_call.1} parent=1 // pred_check
      _
    $region11: #{tpu_custom_call.1} parent=1 // pred_check_branch
      %14 = sbr.rel (0) target = $region13
    $region12: #{tpu_custom_call.1} parent=1 // pred_region
      _
    $region13: #{tpu_custom_call.1} parent=1 // pred_fallthru
      _
    %v15 = vld [vmem:[%s1] sm:$0xff]
    %v16 = vld [vmem:[%s1 + $0x8] sm:$0xff]
    %v17 = vld [vmem:[%s1 + $0x10] sm:$0xff]
    %v18 = vld [vmem:[%s1 + $0x18] sm:$0xff]
    %v19 = vld [vmem:[%s1 + $0x20] sm:$0xff]
    %v20 = vld [vmem:[%s1 + $0x28] sm:$0xff]
    %v21 = vld [vmem:[%s1 + $0x30] sm:$0xff]
    %v22 = vld [vmem:[%s1 + $0x38] sm:$0xff]
    %v23 = vld [vmem:[%s1 + $0x40] sm:$0xff]
    %v24 = vld [vmem:[%s1 + $0x48] sm:$0xff]
    %v25 = vld [vmem:[%s1 + $0x50] sm:$0xff]
    %v26 = vld [vmem:[%s1 + $0x58] sm:$0xff]
    %v27 = vld [vmem:[%s1 + $0x60] sm:$0xff]
    %v28 = vld [vmem:[%s1 + $0x68] sm:$0xff]
    %v29 = vld [vmem:[%s1 + $0x70] sm:$0x1]
    %v30 = vld [vmem:[%s1 + $0x71] sm:$0x1]
    %v31 = vld [vmem:[%s0] sm:$0x3]
    %v32 = vld [vmem:[%s0 + $0x2] sm:$0x3]
    %v33 = vld [vmem:[%s0 + $0x4] sm:$0x3]
    %v34 = vld [vmem:[%s0 + $0x6] sm:$0x3]
    %v35 = vld [vmem:[%s0 + $0x8] sm:$0x3]
    %v36 = vld [vmem:[%s0 + $0xa] sm:$0x3]
    %v37 = vld [vmem:[%s0 + $0xc] sm:$0x3]
    %v38 = vld [vmem:[%s0 + $0xe] sm:$0x3]
    %v39 = vtanh.pop %v31
    %v40 = vtanh.pop %v32
    %v41 = vtanh.pop %v33
    %v42 = vtanh.pop %v34
    %v43 = vtanh.pop %v35
    %v44 = vtanh.pop %v36
    %v45 = vtanh.pop %v37
    %v46 = vtanh.pop %v38
    %v47 = vlaneseq
    %v48 = vshrl.u32 %v47, 7
    %v49 = vsub.s32 0, %v48
    %v50 = vrot.slane %v29, %v49
    %v59 = vcombine.low %v39, %v40
    %v60 = vcombine.low %v41, %v42
    %v62 = vunpack.c.l.s4 1983009808
    %v63 = vunpack.c.0.s8 %v62
    %v64 = vlaneseq
    %v65 = vshrl.u32 %v64, 7
    %v66 = vsub.s32 %v63, %v65
    %v67 = vrot.slane %v59, %v66
    %v69 = vunpack.c.l.s4 1983009808
    %v70 = vunpack.c.0.s8 %v69
    %v71 = vlaneseq
    %v72 = vshrl.u32 %v71, 7
    %v73 = vsub.s32 %v70, %v72
    %v74 = vrot.slane %v60, %v73
    %v75 = vcombine.low %v67, %v74
    %v76 = vcombine.low %v43, %v44
    %v77 = vcombine.low %v45, %v46
    %v79 = vunpack.c.l.s4 1983009808
    %v80 = vunpack.c.0.s8 %v79
    %v81 = vlaneseq
    %v82 = vshrl.u32 %v81, 7
    %v83 = vsub.s32 %v80, %v82
    %v84 = vrot.slane %v76, %v83
    %v86 = vunpack.c.l.s4 1983009808
    %v87 = vunpack.c.0.s8 %v86
    %v88 = vlaneseq
    %v89 = vshrl.u32 %v88, 7
    %v90 = vsub.s32 %v87, %v89
    %v91 = vrot.slane %v77, %v90
    %v92 = vcombine.low %v84, %v91
    %vm93 = vcmask 130048
    %v94 = vsel %vm93, %v75, 0
    %v96 = vsel %vm93, %v92, 0
    %98 = vmatprep.subr.mxu0 0.0
    %99 = vmatpush1.msra.mxu0 0.0
    %100 = vmatprep.subr.mxu0 0.0
    %101 = vmatpush1.msra.mxu0 0.0
    %102 = vmatprep.subr.mxu0 0.0
    %103 = vmatpush1.msra.mxu0 0.0
    %104 = vmatprep.subr.mxu0 0.0
    %105 = vmatpush1.msra.mxu0 0.0
    %106 = vmatprep.subr.mxu0 0.0
    %107 = vmatpush1.msra.mxu0 0.0
    %108 = vmatprep.subr.mxu0 0.0
    %109 = vmatpush1.msra.mxu0 0.0
    %110 = vmatprep.subr.mxu0 0.0
    %111 = vmatpush1.msra.mxu0 0.0
    %112 = vmatprep.subr.mxu0 0.0
    %113 = vmatpush1.msra.mxu0 0.0
    %114 = vmatprep.subr.mxu0 0.0
    %115 = vmatpush1.msra.mxu0 0.0
    %116 = vmatprep.subr.mxu0 0.0
    %117 = vmatpush1.msra.mxu0 0.0
    %118 = vmatprep.subr.mxu0 0.0
    %119 = vmatpush1.msra.mxu0 0.0
    %120 = vmatprep.subr.mxu0 0.0
    %121 = vmatpush1.msra.mxu0 0.0
    %122 = vmatprep.subr.mxu0 0.0
    %123 = vmatpush1.msra.mxu0 0.0
    %124 = vmatprep.subr.mxu0 0.0
    %125 = vmatpush1.msra.mxu0 0.0
    %126 = vmatprep.subr.mxu0 0.0
    %127 = vmatpush1.msra.mxu0 %v16
    %128 = vmatprep.subr.mxu0 0.0
    %129 = vmatpush1.msra.mxu0 %v15
    %130 = vmatprep.subr.mxu0 0.0
    %131 = vmatpush2.msra.mxu0 0.0
    %132 = vmatprep.subr.mxu0 0.0
    %133 = vmatpush2.msra.mxu0 0.0
    %134 = vmatprep.subr.mxu0 0.0
    %135 = vmatpush2.msra.mxu0 0.0
    %136 = vmatprep.subr.mxu0 0.0
    %137 = vmatpush2.msra.mxu0 0.0
    %138 = vmatprep.subr.mxu0 0.0
    %139 = vmatpush2.msra.mxu0 0.0
    %140 = vmatprep.subr.mxu0 0.0
    %141 = vmatpush2.msra.mxu0 0.0
    %142 = vmatprep.subr.mxu0 0.0
    %143 = vmatpush2.msra.mxu0 0.0
    %144 = vmatprep.subr.mxu0 0.0
    %145 = vmatpush2.msra.mxu0 0.0
    %146 = vmatprep.subr.mxu0 0.0
    %147 = vmatpush2.msra.mxu0 0.0
    %148 = vmatprep.subr.mxu0 0.0
    %149 = vmatpush2.msra.mxu0 0.0
    %150 = vmatprep.subr.mxu0 0.0
    %151 = vmatpush2.msra.mxu0 0.0
    %152 = vmatprep.subr.mxu0 0.0
    %153 = vmatpush2.msra.mxu0 0.0
    %154 = vmatprep.subr.mxu0 0.0
    %155 = vmatpush2.msra.mxu0 0.0
    %156 = vmatprep.subr.mxu0 0.0
    %157 = vmatpush2.msra.mxu0 0.0
    %158 = vmatprep.subr.mxu0 0.0
    %159 = vmatpush2.msra.mxu0 0.0
    %160 = vmatprep.subr.mxu0 0.0
    %161 = vmatpush2.msra.mxu0 0.0
    %162 = vmatprep.mubr.f32.mxu0 0.0
    %163 = vmatmul.mubr.f32.gmra.mxu0 %v94
    %v164 = vpop.f32.mrf.mxu0
    %v165 = vadd.f32 %v50, %v164
    %v166 = vpop.f32.mrf.mxu0
    %167 = vmatprep.mubr.f32.mxu0 0.0
    %168 = vmatmul.mubr.f32.gmra.mxu0 %v96
    %v169 = vpop.f32.mrf.mxu0
    %v170 = vadd.f32 %v50, %v169
    %v171 = vpop.f32.mrf.mxu0
    %172 = vdwg.mxu0
    %173 = vst [vmem:[#allocation2] sm:$0xff] %v165
    %174 = vst [vmem:[#allocation2 + $0x8] sm:$0xff] %v170
    %v175 = vlaneseq
    %v176 = vshrl.u32 %v175, 7
    %v177 = vsub.s32 0, %v176
    %v178 = vrot.slane %v30, %v177
    %v179 = vld [vmem:[#allocation2] sm:$0x3]
    %vm180 = vcmask 261120
    %v182 = vsel %vm180, 0.0, 0
    %184 = vmatprep.subr.mxu0 0.0
    %185 = vmatpush1.msra.mxu0 0.0
    %186 = vmatprep.subr.mxu0 0.0
    %187 = vmatpush1.msra.mxu0 0.0
    %188 = vmatprep.subr.mxu0 0.0
    %189 = vmatpush1.msra.mxu0 0.0
    %190 = vmatprep.subr.mxu0 0.0
    %191 = vmatpush1.msra.mxu0 0.0
    %192 = vmatprep.subr.mxu0 0.0
    %193 = vmatpush1.msra.mxu0 0.0
    %194 = vmatprep.subr.mxu0 0.0
    %195 = vmatpush1.msra.mxu0 0.0
    %196 = vmatprep.subr.mxu0 0.0
    %197 = vmatpush1.msra.mxu0 0.0
    %198 = vmatprep.subr.mxu0 0.0
    %199 = vmatpush1.msra.mxu0 0.0
    %200 = vmatprep.subr.mxu0 0.0
    %201 = vmatpush1.msra.mxu0 0.0
    %202 = vmatprep.subr.mxu0 0.0
    %203 = vmatpush1.msra.mxu0 0.0
    %204 = vmatprep.subr.mxu0 0.0
    %205 = vmatpush1.msra.mxu0 0.0
    %206 = vmatprep.subr.mxu0 0.0
    %207 = vmatpush1.msra.mxu0 0.0
    %208 = vmatprep.subr.mxu0 0.0
    %209 = vmatpush1.msra.mxu0 %v20
    %210 = vmatprep.subr.mxu0 0.0
    %211 = vmatpush1.msra.mxu0 %v19
    %212 = vmatprep.subr.mxu0 0.0
    %213 = vmatpush1.msra.mxu0 %v18
    %214 = vmatprep.subr.mxu0 0.0
    %215 = vmatpush1.msra.mxu0 %v17
    %216 = vmatprep.subr.mxu0 0.0
    %217 = vmatpush2.msra.mxu0 0.0
    %218 = vmatprep.subr.mxu0 0.0
    %219 = vmatpush2.msra.mxu0 0.0
    %220 = vmatprep.subr.mxu0 0.0
    %221 = vmatpush2.msra.mxu0 0.0
    %222 = vmatprep.subr.mxu0 0.0
    %223 = vmatpush2.msra.mxu0 0.0
    %224 = vmatprep.subr.mxu0 0.0
    %225 = vmatpush2.msra.mxu0 0.0
    %226 = vmatprep.subr.mxu0 0.0
    %227 = vmatpush2.msra.mxu0 0.0
    %228 = vmatprep.subr.mxu0 0.0
    %229 = vmatpush2.msra.mxu0 0.0
    %230 = vmatprep.subr.mxu0 0.0
    %231 = vmatpush2.msra.mxu0 0.0
    %232 = vmatprep.subr.mxu0 0.0
    %233 = vmatpush2.msra.mxu0 0.0
    %234 = vmatprep.subr.mxu0 0.0
    %235 = vmatpush2.msra.mxu0 0.0
    %236 = vmatprep.subr.mxu0 0.0
    %237 = vmatpush2.msra.mxu0 0.0
    %238 = vmatprep.subr.mxu0 0.0
    %239 = vmatpush2.msra.mxu0 0.0
    %240 = vmatprep.subr.mxu0 0.0
    %241 = vmatpush2.msra.mxu0 0.0
    %242 = vmatprep.subr.mxu0 0.0
    %243 = vmatpush2.msra.mxu0 0.0
    %244 = vmatprep.subr.mxu0 0.0
    %245 = vmatpush2.msra.mxu0 0.0
    %246 = vmatprep.subr.mxu0 0.0
    %247 = vmatpush2.msra.mxu0 0.0
    %248 = vmatprep.mubr.f32.mxu0 0.0
    %249 = vmatmul.mubr.f32.gmra.mxu0 %v182
    %v250 = vpop.f32.mrf.mxu0
    %v251 = vadd.f32 0.0, %v250
    %v252 = vpop.f32.mrf.mxu0
    %253 = vdwg.mxu0
    %v254 = vadd.f32 %v179, %v251
    %v255 = vxor.u32 %v254, 2147483648
    %v256 = vmul.f32 %v255, 1.442695
    %v257 = vpow.pop %v256
    %v258 = vadd.f32 %v257, 1.0
    %v259 = vrcp.pop %v258
    %v260 = vmul.f32 1.0, %v259
    %v261 = vtanh.pop %v254
    %v262 = vmul.f32 %v260, 0.0
    %264 = vrot.lane.b32.xlu0 %v261, 64
    %v265 = vpop.permute.xlu0 %264
    %v267 = vmul.f32 %v260, %v265
    %269 = vrot.lane.b32.xlu0 %v267, 32
    %v270 = vpop.permute.xlu0 %269
    %v272 = vadd.f32 %v262, %v270
    %v273 = vtanh.pop %v272
    %275 = vrot.lane.b32.xlu0 %v273, 64
    %v276 = vpop.permute.xlu0 %275
    %v278 = vmul.f32 %v260, %v276
    %280 = vrot.lane.b32.xlu0 %v278, 32
    %v281 = vpop.permute.xlu0 %280
    %v283 = vsel %vm180, %v281, 0.0
    %vm284 = vcmask 523264
    %v286 = vsel %vm284, %v283, 0
    %288 = vmatprep.subr.mxu0 0.0
    %289 = vmatpush1.msra.mxu0 0.0
    %290 = vmatprep.subr.mxu0 0.0
    %291 = vmatpush1.msra.mxu0 0.0
    %292 = vmatprep.subr.mxu0 0.0
    %293 = vmatpush1.msra.mxu0 0.0
    %294 = vmatprep.subr.mxu0 0.0
    %295 = vmatpush1.msra.mxu0 0.0
    %296 = vmatprep.subr.mxu0 0.0
    %297 = vmatpush1.msra.mxu0 0.0
    %298 = vmatprep.subr.mxu0 0.0
    %299 = vmatpush1.msra.mxu0 0.0
    %300 = vmatprep.subr.mxu0 0.0
    %301 = vmatpush1.msra.mxu0 0.0
    %302 = vmatprep.subr.mxu0 0.0
    %303 = vmatpush1.msra.mxu0 0.0
    %304 = vmatprep.subr.mxu0 0.0
    %305 = vmatpush1.msra.mxu0 %v28
    %306 = vmatprep.subr.mxu0 0.0
    %307 = vmatpush1.msra.mxu0 %v27
    %308 = vmatprep.subr.mxu0 0.0
    %309 = vmatpush1.msra.mxu0 %v26
    %310 = vmatprep.subr.mxu0 0.0
    %311 = vmatpush1.msra.mxu0 %v25
    %312 = vmatprep.subr.mxu0 0.0
    %313 = vmatpush1.msra.mxu0 %v24
    %314 = vmatprep.subr.mxu0 0.0
    %315 = vmatpush1.msra.mxu0 %v23
    %316 = vmatprep.subr.mxu0 0.0
    %317 = vmatpush1.msra.mxu0 %v22
    %318 = vmatprep.subr.mxu0 0.0
    %319 = vmatpush1.msra.mxu0 %v21
    %320 = vmatprep.subr.mxu0 0.0
    %321 = vmatpush2.msra.mxu0 0.0
    %322 = vmatprep.subr.mxu0 0.0
    %323 = vmatpush2.msra.mxu0 0.0
    %324 = vmatprep.subr.mxu0 0.0
    %325 = vmatpush2.msra.mxu0 0.0
    %326 = vmatprep.subr.mxu0 0.0
    %327 = vmatpush2.msra.mxu0 0.0
    %328 = vmatprep.subr.mxu0 0.0
    %329 = vmatpush2.msra.mxu0 0.0
    %330 = vmatprep.subr.mxu0 0.0
    %331 = vmatpush2.msra.mxu0 0.0
    %332 = vmatprep.subr.mxu0 0.0
    %333 = vmatpush2.msra.mxu0 0.0
    %334 = vmatprep.subr.mxu0 0.0
    %335 = vmatpush2.msra.mxu0 0.0
    %336 = vmatprep.subr.mxu0 0.0
    %337 = vmatpush2.msra.mxu0 0.0
    %338 = vmatprep.subr.mxu0 0.0
    %339 = vmatpush2.msra.mxu0 0.0
    %340 = vmatprep.subr.mxu0 0.0
    %341 = vmatpush2.msra.mxu0 0.0
    %342 = vmatprep.subr.mxu0 0.0
    %343 = vmatpush2.msra.mxu0 0.0
    %344 = vmatprep.subr.mxu0 0.0
    %345 = vmatpush2.msra.mxu0 0.0
    %346 = vmatprep.subr.mxu0 0.0
    %347 = vmatpush2.msra.mxu0 0.0
    %348 = vmatprep.subr.mxu0 0.0
    %349 = vmatpush2.msra.mxu0 0.0
    %350 = vmatprep.subr.mxu0 0.0
    %351 = vmatpush2.msra.mxu0 0.0
    %352 = vmatprep.mubr.f32.mxu0 0.0
    %353 = vmatmul.mubr.f32.gmra.mxu0 %v286
    %v354 = vpop.f32.mrf.mxu0
    %v355 = vadd.f32 %v178, %v354
    %v356 = vpop.f32.mrf.mxu0
    %357 = vdwg.mxu0
    %v358 = vxor.u32 %v355, 2147483648
    %v359 = vmul.f32 %v358, 1.442695
    %v360 = vpow.pop %v359
    %v361 = vadd.f32 %v360, 1.0
    %v362 = vrcp.pop %v361
    %v363 = vmul.f32 1.0, %v362
    %v364 = vtanh.pop %v355
    %v365 = vmul.f32 %v363, 0.0
    %367 = vrot.lane.b32.xlu0 %v364, 64
    %v368 = vpop.permute.xlu0 %367
    %v370 = vmul.f32 %v363, %v368
    %372 = vrot.lane.b32.xlu0 %v370, 32
    %v373 = vpop.permute.xlu0 %372
    %v375 = vadd.f32 %v365, %v373
    %v376 = vtanh.pop %v375
    %378 = vrot.lane.b32.xlu0 %v376, 64
    %v379 = vpop.permute.xlu0 %378
    %v381 = vmul.f32 %v363, %v379
    %s382 = scalar_lea.vmem [#allocation2], 2
    %v383 = vld [vmem:[%s382] sm:$0x3]
    %v384 = vsel %vm180, %v281, 0
    %386 = vmatprep.subr.mxu0 0.0
    %387 = vmatpush1.msra.mxu0 0.0
    %388 = vmatprep.subr.mxu0 0.0
    %389 = vmatpush1.msra.mxu0 0.0
    %390 = vmatprep.subr.mxu0 0.0
    %391 = vmatpush1.msra.mxu0 0.0
    %392 = vmatprep.subr.mxu0 0.0
    %393 = vmatpush1.msra.mxu0 0.0
    %394 = vmatprep.subr.mxu0 0.0
    %395 = vmatpush1.msra.mxu0 0.0
    %396 = vmatprep.subr.mxu0 0.0
    %397 = vmatpush1.msra.mxu0 0.0
    %398 = vmatprep.subr.mxu0 0.0
    %399 = vmatpush1.msra.mxu0 0.0
    %400 = vmatprep.subr.mxu0 0.0
    %401 = vmatpush1.msra.mxu0 0.0
    %402 = vmatprep.subr.mxu0 0.0
    %403 = vmatpush1.msra.mxu0 0.0
    %404 = vmatprep.subr.mxu0 0.0
    %405 = vmatpush1.msra.mxu0 0.0
    %406 = vmatprep.subr.mxu0 0.0
    %407 = vmatpush1.msra.mxu0 0.0
    %408 = vmatprep.subr.mxu0 0.0
    %409 = vmatpush1.msra.mxu0 0.0
    %410 = vmatprep.subr.mxu0 0.0
    %411 = vmatpush1.msra.mxu0 %v20
    %412 = vmatprep.subr.mxu0 0.0
    %413 = vmatpush1.msra.mxu0 %v19
    %414 = vmatprep.subr.mxu0 0.0
    %415 = vmatpush1.msra.mxu0 %v18
    %416 = vmatprep.subr.mxu0 0.0
    %417 = vmatpush1.msra.mxu0 %v17
    %418 = vmatprep.subr.mxu0 0.0
    %419 = vmatpush2.msra.mxu0 0.0
    %420 = vmatprep.subr.mxu0 0.0
    %421 = vmatpush2.msra.mxu0 0.0
    %422 = vmatprep.subr.mxu0 0.0
    %423 = vmatpush2.msra.mxu0 0.0
    %424 = vmatprep.subr.mxu0 0.0
    %425 = vmatpush2.msra.mxu0 0.0
    %426 = vmatprep.subr.mxu0 0.0
    %427 = vmatpush2.msra.mxu0 0.0
    %428 = vmatprep.subr.mxu0 0.0
    %429 = vmatpush2.msra.mxu0 0.0
    %430 = vmatprep.subr.mxu0 0.0
    %431 = vmatpush2.msra.mxu0 0.0
    %432 = vmatprep.subr.mxu0 0.0
    %433 = vmatpush2.msra.mxu0 0.0
    %434 = vmatprep.subr.mxu0 0.0
    %435 = vmatpush2.msra.mxu0 0.0
    %436 = vmatprep.subr.mxu0 0.0
    %437 = vmatpush2.msra.mxu0 0.0
    %438 = vmatprep.subr.mxu0 0.0
    %439 = vmatpush2.msra.mxu0 0.0
    %440 = vmatprep.subr.mxu0 0.0
    %441 = vmatpush2.msra.mxu0 0.0
    %442 = vmatprep.subr.mxu0 0.0
    %443 = vmatpush2.msra.mxu0 0.0
    %444 = vmatprep.subr.mxu0 0.0
    %445 = vmatpush2.msra.mxu0 0.0
    %446 = vmatprep.subr.mxu0 0.0
    %447 = vmatpush2.msra.mxu0 0.0
    %448 = vmatprep.subr.mxu0 0.0
    %449 = vmatpush2.msra.mxu0 0.0
    %450 = vmatprep.mubr.f32.mxu0 0.0
    %451 = vmatmul.mubr.f32.gmra.mxu0 %v384
    %v452 = vpop.f32.mrf.mxu0
    %v453 = vadd.f32 0.0, %v452
    %v454 = vpop.f32.mrf.mxu0
    %455 = vdwg.mxu0
    %v456 = vadd.f32 %v383, %v453
    %v457 = vxor.u32 %v456, 2147483648
    %v458 = vmul.f32 %v457, 1.442695
    %v459 = vpow.pop %v458
    %v460 = vadd.f32 %v459, 1.0
    %v461 = vrcp.pop %v460
    %v462 = vmul.f32 1.0, %v461
    %v463 = vtanh.pop %v456
    %v464 = vmul.f32 %v462, %v272
    %466 = vrot.lane.b32.xlu0 %v463, 64
    %v467 = vpop.permute.xlu0 %466
    %v469 = vmul.f32 %v462, %v467
    %471 = vrot.lane.b32.xlu0 %v469, 32
    %v472 = vpop.permute.xlu0 %471
    %v474 = vadd.f32 %v464, %v472
    %v475 = vtanh.pop %v474
    %477 = vrot.lane.b32.xlu0 %v475, 64
    %v478 = vpop.permute.xlu0 %477
    %v480 = vmul.f32 %v462, %v478
    %482 = vrot.lane.b32.xlu0 %v480, 32
    %v483 = vpop.permute.xlu0 %482
    %486 = vrot.lane.b32.xlu0 %v381, 64
    %v487 = vpop.permute.xlu0 %486
    %v489 = vsel %vm180, %v483, %v487
    %v491 = vsel %vm284, %v489, 0
    %493 = vmatprep.subr.mxu0 0.0
    %494 = vmatpush1.msra.mxu0 0.0
    %495 = vmatprep.subr.mxu0 0.0
    %496 = vmatpush1.msra.mxu0 0.0
    %497 = vmatprep.subr.mxu0 0.0
    %498 = vmatpush1.msra.mxu0 0.0
    %499 = vmatprep.subr.mxu0 0.0
    %500 = vmatpush1.msra.mxu0 0.0
    %501 = vmatprep.subr.mxu0 0.0
    %502 = vmatpush1.msra.mxu0 0.0
    %503 = vmatprep.subr.mxu0 0.0
    %504 = vmatpush1.msra.mxu0 0.0
    %505 = vmatprep.subr.mxu0 0.0
    %506 = vmatpush1.msra.mxu0 0.0
    %507 = vmatprep.subr.mxu0 0.0
    %508 = vmatpush1.msra.mxu0 0.0
    %509 = vmatprep.subr.mxu0 0.0
    %510 = vmatpush1.msra.mxu0 %v28
    %511 = vmatprep.subr.mxu0 0.0
    %512 = vmatpush1.msra.mxu0 %v27
    %513 = vmatprep.subr.mxu0 0.0
    %514 = vmatpush1.msra.mxu0 %v26
    %515 = vmatprep.subr.mxu0 0.0
    %516 = vmatpush1.msra.mxu0 %v25
    %517 = vmatprep.subr.mxu0 0.0
    %518 = vmatpush1.msra.mxu0 %v24
    %519 = vmatprep.subr.mxu0 0.0
    %520 = vmatpush1.msra.mxu0 %v23
    %521 = vmatprep.subr.mxu0 0.0
    %522 = vmatpush1.msra.mxu0 %v22
    %523 = vmatprep.subr.mxu0 0.0
    %524 = vmatpush1.msra.mxu0 %v21
    %525 = vmatprep.subr.mxu0 0.0
    %526 = vmatpush2.msra.mxu0 0.0
    %527 = vmatprep.subr.mxu0 0.0
    %528 = vmatpush2.msra.mxu0 0.0
    %529 = vmatprep.subr.mxu0 0.0
    %530 = vmatpush2.msra.mxu0 0.0
    %531 = vmatprep.subr.mxu0 0.0
    %532 = vmatpush2.msra.mxu0 0.0
    %533 = vmatprep.subr.mxu0 0.0
    %534 = vmatpush2.msra.mxu0 0.0
    %535 = vmatprep.subr.mxu0 0.0
    %536 = vmatpush2.msra.mxu0 0.0
    %537 = vmatprep.subr.mxu0 0.0
    %538 = vmatpush2.msra.mxu0 0.0
    %539 = vmatprep.subr.mxu0 0.0
    %540 = vmatpush2.msra.mxu0 0.0
    %541 = vmatprep.subr.mxu0 0.0
    %542 = vmatpush2.msra.mxu0 0.0
    %543 = vmatprep.subr.mxu0 0.0
    %544 = vmatpush2.msra.mxu0 0.0
    %545 = vmatprep.subr.mxu0 0.0
    %546 = vmatpush2.msra.mxu0 0.0
    %547 = vmatprep.subr.mxu0 0.0
    %548 = vmatpush2.msra.mxu0 0.0
    %549 = vmatprep.subr.mxu0 0.0
    %550 = vmatpush2.msra.mxu0 0.0
    %551 = vmatprep.subr.mxu0 0.0
    %552 = vmatpush2.msra.mxu0 0.0
    %553 = vmatprep.subr.mxu0 0.0
    %554 = vmatpush2.msra.mxu0 0.0
    %555 = vmatprep.subr.mxu0 0.0
    %556 = vmatpush2.msra.mxu0 0.0
    %557 = vmatprep.mubr.f32.mxu0 0.0
    %558 = vmatmul.mubr.f32.gmra.mxu0 %v491
    %v559 = vpop.f32.mrf.mxu0
    %v560 = vadd.f32 %v178, %v559
    %v561 = vpop.f32.mrf.mxu0
    %562 = vdwg.mxu0
    %v563 = vxor.u32 %v560, 2147483648
    %v564 = vmul.f32 %v563, 1.442695
    %v565 = vpow.pop %v564
    %v566 = vadd.f32 %v565, 1.0
    %v567 = vrcp.pop %v566
    %v568 = vmul.f32 1.0, %v567
    %v569 = vtanh.pop %v560
    %v570 = vmul.f32 %v568, %v375
    %572 = vrot.lane.b32.xlu0 %v569, 64
    %v573 = vpop.permute.xlu0 %572
    %v575 = vmul.f32 %v568, %v573
    %577 = vrot.lane.b32.xlu0 %v575, 32
    %v578 = vpop.permute.xlu0 %577
    %v580 = vadd.f32 %v570, %v578
    %v581 = vtanh.pop %v580
    %583 = vrot.lane.b32.xlu0 %v581, 64
    %v584 = vpop.permute.xlu0 %583
    %v586 = vmul.f32 %v568, %v584
    %s587 = scalar_lea.vmem [#allocation2], 4
    %v588 = vld [vmem:[%s587] sm:$0x3]
    %v589 = vsel %vm180, %v483, 0
    %591 = vmatprep.subr.mxu0 0.0
    %592 = vmatpush1.msra.mxu0 0.0
    %593 = vmatprep.subr.mxu0 0.0
    %594 = vmatpush1.msra.mxu0 0.0
    %595 = vmatprep.subr.mxu0 0.0
    %596 = vmatpush1.msra.mxu0 0.0
    %597 = vmatprep.subr.mxu0 0.0
    %598 = vmatpush1.msra.mxu0 0.0
    %599 = vmatprep.subr.mxu0 0.0
    %600 = vmatpush1.msra.mxu0 0.0
    %601 = vmatprep.subr.mxu0 0.0
    %602 = vmatpush1.msra.mxu0 0.0
    %603 = vmatprep.subr.mxu0 0.0
    %604 = vmatpush1.msra.mxu0 0.0
    %605 = vmatprep.subr.mxu0 0.0
    %606 = vmatpush1.msra.mxu0 0.0
    %607 = vmatprep.subr.mxu0 0.0
    %608 = vmatpush1.msra.mxu0 0.0
    %609 = vmatprep.subr.mxu0 0.0
    %610 = vmatpush1.msra.mxu0 0.0
    %611 = vmatprep.subr.mxu0 0.0
    %612 = vmatpush1.msra.mxu0 0.0
    %613 = vmatprep.subr.mxu0 0.0
    %614 = vmatpush1.msra.mxu0 0.0
    %615 = vmatprep.subr.mxu0 0.0
    %616 = vmatpush1.msra.mxu0 %v20
    %617 = vmatprep.subr.mxu0 0.0
    %618 = vmatpush1.msra.mxu0 %v19
    %619 = vmatprep.subr.mxu0 0.0
    %620 = vmatpush1.msra.mxu0 %v18
    %621 = vmatprep.subr.mxu0 0.0
    %622 = vmatpush1.msra.mxu0 %v17
    %623 = vmatprep.subr.mxu0 0.0
    %624 = vmatpush2.msra.mxu0 0.0
    %625 = vmatprep.subr.mxu0 0.0
    %626 = vmatpush2.msra.mxu0 0.0
    %627 = vmatprep.subr.mxu0 0.0
    %628 = vmatpush2.msra.mxu0 0.0
    %629 = vmatprep.subr.mxu0 0.0
    %630 = vmatpush2.msra.mxu0 0.0
    %631 = vmatprep.subr.mxu0 0.0
    %632 = vmatpush2.msra.mxu0 0.0
    %633 = vmatprep.subr.mxu0 0.0
    %634 = vmatpush2.msra.mxu0 0.0
    %635 = vmatprep.subr.mxu0 0.0
    %636 = vmatpush2.msra.mxu0 0.0
    %637 = vmatprep.subr.mxu0 0.0
    %638 = vmatpush2.msra.mxu0 0.0
    %639 = vmatprep.subr.mxu0 0.0
    %640 = vmatpush2.msra.mxu0 0.0
    %641 = vmatprep.subr.mxu0 0.0
    %642 = vmatpush2.msra.mxu0 0.0
    %643 = vmatprep.subr.mxu0 0.0
    %644 = vmatpush2.msra.mxu0 0.0
    %645 = vmatprep.subr.mxu0 0.0
    %646 = vmatpush2.msra.mxu0 0.0
    %647 = vmatprep.subr.mxu0 0.0
    %648 = vmatpush2.msra.mxu0 0.0
    %649 = vmatprep.subr.mxu0 0.0
    %650 = vmatpush2.msra.mxu0 0.0
    %651 = vmatprep.subr.mxu0 0.0
    %652 = vmatpush2.msra.mxu0 0.0
    %653 = vmatprep.subr.mxu0 0.0
    %654 = vmatpush2.msra.mxu0 0.0
    %655 = vmatprep.mubr.f32.mxu0 0.0
    %656 = vmatmul.mubr.f32.gmra.mxu0 %v589
    %v657 = vpop.f32.mrf.mxu0
    %v658 = vadd.f32 0.0, %v657
    %v659 = vpop.f32.mrf.mxu0
    %660 = vdwg.mxu0
    %v661 = vadd.f32 %v588, %v658
    %v662 = vxor.u32 %v661, 2147483648
    %v663 = vmul.f32 %v662, 1.442695
    %v664 = vpow.pop %v663
    %v665 = vadd.f32 %v664, 1.0
    %v666 = vrcp.pop %v665
    %v667 = vmul.f32 1.0, %v666
    %v668 = vtanh.pop %v661
    %v669 = vmul.f32 %v667, %v474
    %671 = vrot.lane.b32.xlu0 %v668, 64
    %v672 = vpop.permute.xlu0 %671
    %v674 = vmul.f32 %v667, %v672
    %676 = vrot.lane.b32.xlu0 %v674, 32
    %v677 = vpop.permute.xlu0 %676
    %v679 = vadd.f32 %v669, %v677
    %v680 = vtanh.pop %v679
    %682 = vrot.lane.b32.xlu0 %v680, 64
    %v683 = vpop.permute.xlu0 %682
    %v685 = vmul.f32 %v667, %v683
    %687 = vrot.lane.b32.xlu0 %v685, 32
    %v688 = vpop.permute.xlu0 %687
    %691 = vrot.lane.b32.xlu0 %v586, 64
    %v692 = vpop.permute.xlu0 %691
    %v694 = vsel %vm180, %v688, %v692
    %v696 = vsel %vm284, %v694, 0
    %698 = vmatprep.subr.mxu0 0.0
    %699 = vmatpush1.msra.mxu0 0.0
    %700 = vmatprep.subr.mxu0 0.0
    %701 = vmatpush1.msra.mxu0 0.0
    %702 = vmatprep.subr.mxu0 0.0
    %703 = vmatpush1.msra.mxu0 0.0
    %704 = vmatprep.subr.mxu0 0.0
    %705 = vmatpush1.msra.mxu0 0.0
    %706 = vmatprep.subr.mxu0 0.0
    %707 = vmatpush1.msra.mxu0 0.0
    %708 = vmatprep.subr.mxu0 0.0
    %709 = vmatpush1.msra.mxu0 0.0
    %710 = vmatprep.subr.mxu0 0.0
    %711 = vmatpush1.msra.mxu0 0.0
    %712 = vmatprep.subr.mxu0 0.0
    %713 = vmatpush1.msra.mxu0 0.0
    %714 = vmatprep.subr.mxu0 0.0
    %715 = vmatpush1.msra.mxu0 %v28
    %716 = vmatprep.subr.mxu0 0.0
    %717 = vmatpush1.msra.mxu0 %v27
    %718 = vmatprep.subr.mxu0 0.0
    %719 = vmatpush1.msra.mxu0 %v26
    %720 = vmatprep.subr.mxu0 0.0
    %721 = vmatpush1.msra.mxu0 %v25
    %722 = vmatprep.subr.mxu0 0.0
    %723 = vmatpush1.msra.mxu0 %v24
    %724 = vmatprep.subr.mxu0 0.0
    %725 = vmatpush1.msra.mxu0 %v23
    %726 = vmatprep.subr.mxu0 0.0
    %727 = vmatpush1.msra.mxu0 %v22
    %728 = vmatprep.subr.mxu0 0.0
    %729 = vmatpush1.msra.mxu0 %v21
    %730 = vmatprep.subr.mxu0 0.0
    %731 = vmatpush2.msra.mxu0 0.0
    %732 = vmatprep.subr.mxu0 0.0
    %733 = vmatpush2.msra.mxu0 0.0
    %734 = vmatprep.subr.mxu0 0.0
    %735 = vmatpush2.msra.mxu0 0.0
    %736 = vmatprep.subr.mxu0 0.0
    %737 = vmatpush2.msra.mxu0 0.0
    %738 = vmatprep.subr.mxu0 0.0
    %739 = vmatpush2.msra.mxu0 0.0
    %740 = vmatprep.subr.mxu0 0.0
    %741 = vmatpush2.msra.mxu0 0.0
    %742 = vmatprep.subr.mxu0 0.0
    %743 = vmatpush2.msra.mxu0 0.0
    %744 = vmatprep.subr.mxu0 0.0
    %745 = vmatpush2.msra.mxu0 0.0
    %746 = vmatprep.subr.mxu0 0.0
    %747 = vmatpush2.msra.mxu0 0.0
    %748 = vmatprep.subr.mxu0 0.0
    %749 = vmatpush2.msra.mxu0 0.0
    %750 = vmatprep.subr.mxu0 0.0
    %751 = vmatpush2.msra.mxu0 0.0
    %752 = vmatprep.subr.mxu0 0.0
    %753 = vmatpush2.msra.mxu0 0.0
    %754 = vmatprep.subr.mxu0 0.0
    %755 = vmatpush2.msra.mxu0 0.0
    %756 = vmatprep.subr.mxu0 0.0
    %757 = vmatpush2.msra.mxu0 0.0
    %758 = vmatprep.subr.mxu0 0.0
    %759 = vmatpush2.msra.mxu0 0.0
    %760 = vmatprep.subr.mxu0 0.0
    %761 = vmatpush2.msra.mxu0 0.0
    %762 = vmatprep.mubr.f32.mxu0 0.0
    %763 = vmatmul.mubr.f32.gmra.mxu0 %v696
    %v764 = vpop.f32.mrf.mxu0
    %v765 = vadd.f32 %v178, %v764
    %v766 = vpop.f32.mrf.mxu0
    %767 = vdwg.mxu0
    %v768 = vxor.u32 %v765, 2147483648
    %v769 = vmul.f32 %v768, 1.442695
    %v770 = vpow.pop %v769
    %v771 = vadd.f32 %v770, 1.0
    %v772 = vrcp.pop %v771
    %v773 = vmul.f32 1.0, %v772
    %v774 = vtanh.pop %v765
    %v775 = vmul.f32 %v773, %v580
    %777 = vrot.lane.b32.xlu0 %v774, 64
    %v778 = vpop.permute.xlu0 %777
    %v780 = vmul.f32 %v773, %v778
    %782 = vrot.lane.b32.xlu0 %v780, 32
    %v783 = vpop.permute.xlu0 %782
    %v785 = vadd.f32 %v775, %v783
    %v786 = vtanh.pop %v785
    %788 = vrot.lane.b32.xlu0 %v786, 64
    %v789 = vpop.permute.xlu0 %788
    %v791 = vmul.f32 %v773, %v789
    %s792 = scalar_lea.vmem [#allocation2], 6
    %v793 = vld [vmem:[%s792] sm:$0x3]
    %v794 = vsel %vm180, %v688, 0
    %796 = vmatprep.subr.mxu0 0.0
    %797 = vmatpush1.msra.mxu0 0.0
    %798 = vmatprep.subr.mxu0 0.0
    %799 = vmatpush1.msra.mxu0 0.0
    %800 = vmatprep.subr.mxu0 0.0
    %801 = vmatpush1.msra.mxu0 0.0
    %802 = vmatprep.subr.mxu0 0.0
    %803 = vmatpush1.msra.mxu0 0.0
    %804 = vmatprep.subr.mxu0 0.0
    %805 = vmatpush1.msra.mxu0 0.0
    %806 = vmatprep.subr.mxu0 0.0
    %807 = vmatpush1.msra.mxu0 0.0
    %808 = vmatprep.subr.mxu0 0.0
    %809 = vmatpush1.msra.mxu0 0.0
    %810 = vmatprep.subr.mxu0 0.0
    %811 = vmatpush1.msra.mxu0 0.0
    %812 = vmatprep.subr.mxu0 0.0
    %813 = vmatpush1.msra.mxu0 0.0
    %814 = vmatprep.subr.mxu0 0.0
    %815 = vmatpush1.msra.mxu0 0.0
    %816 = vmatprep.subr.mxu0 0.0
    %817 = vmatpush1.msra.mxu0 0.0
    %818 = vmatprep.subr.mxu0 0.0
    %819 = vmatpush1.msra.mxu0 0.0
    %820 = vmatprep.subr.mxu0 0.0
    %821 = vmatpush1.msra.mxu0 %v20
    %822 = vmatprep.subr.mxu0 0.0
    %823 = vmatpush1.msra.mxu0 %v19
    %824 = vmatprep.subr.mxu0 0.0
    %825 = vmatpush1.msra.mxu0 %v18
    %826 = vmatprep.subr.mxu0 0.0
    %827 = vmatpush1.msra.mxu0 %v17
    %828 = vmatprep.subr.mxu0 0.0
    %829 = vmatpush2.msra.mxu0 0.0
    %830 = vmatprep.subr.mxu0 0.0
    %831 = vmatpush2.msra.mxu0 0.0
    %832 = vmatprep.subr.mxu0 0.0
    %833 = vmatpush2.msra.mxu0 0.0
    %834 = vmatprep.subr.mxu0 0.0
    %835 = vmatpush2.msra.mxu0 0.0
    %836 = vmatprep.subr.mxu0 0.0
    %837 = vmatpush2.msra.mxu0 0.0
    %838 = vmatprep.subr.mxu0 0.0
    %839 = vmatpush2.msra.mxu0 0.0
    %840 = vmatprep.subr.mxu0 0.0
    %841 = vmatpush2.msra.mxu0 0.0
    %842 = vmatprep.subr.mxu0 0.0
    %843 = vmatpush2.msra.mxu0 0.0
    %844 = vmatprep.subr.mxu0 0.0
    %845 = vmatpush2.msra.mxu0 0.0
    %846 = vmatprep.subr.mxu0 0.0
    %847 = vmatpush2.msra.mxu0 0.0
    %848 = vmatprep.subr.mxu0 0.0
    %849 = vmatpush2.msra.mxu0 0.0
    %850 = vmatprep.subr.mxu0 0.0
    %851 = vmatpush2.msra.mxu0 0.0
    %852 = vmatprep.subr.mxu0 0.0
    %853 = vmatpush2.msra.mxu0 0.0
    %854 = vmatprep.subr.mxu0 0.0
    %855 = vmatpush2.msra.mxu0 0.0
    %856 = vmatprep.subr.mxu0 0.0
    %857 = vmatpush2.msra.mxu0 0.0
    %858 = vmatprep.subr.mxu0 0.0
    %859 = vmatpush2.msra.mxu0 0.0
    %860 = vmatprep.mubr.f32.mxu0 0.0
    %861 = vmatmul.mubr.f32.gmra.mxu0 %v794
    %v862 = vpop.f32.mrf.mxu0
    %v863 = vadd.f32 0.0, %v862
    %v864 = vpop.f32.mrf.mxu0
    %865 = vdwg.mxu0
    %v866 = vadd.f32 %v793, %v863
    %v867 = vxor.u32 %v866, 2147483648
    %v868 = vmul.f32 %v867, 1.442695
    %v869 = vpow.pop %v868
    %v870 = vadd.f32 %v869, 1.0
    %v871 = vrcp.pop %v870
    %v872 = vmul.f32 1.0, %v871
    %v873 = vtanh.pop %v866
    %v874 = vmul.f32 %v872, %v679
    %876 = vrot.lane.b32.xlu0 %v873, 64
    %v877 = vpop.permute.xlu0 %876
    %v879 = vmul.f32 %v872, %v877
    %881 = vrot.lane.b32.xlu0 %v879, 32
    %v882 = vpop.permute.xlu0 %881
    %v884 = vadd.f32 %v874, %v882
    %v885 = vtanh.pop %v884
    %887 = vrot.lane.b32.xlu0 %v885, 64
    %v888 = vpop.permute.xlu0 %887
    %v890 = vmul.f32 %v872, %v888
    %892 = vrot.lane.b32.xlu0 %v890, 32
    %v893 = vpop.permute.xlu0 %892
    %896 = vrot.lane.b32.xlu0 %v791, 64
    %v897 = vpop.permute.xlu0 %896
    %v899 = vsel %vm180, %v893, %v897
    %v901 = vsel %vm284, %v899, 0
    %903 = vmatprep.subr.mxu0 0.0
    %904 = vmatpush1.msra.mxu0 0.0
    %905 = vmatprep.subr.mxu0 0.0
    %906 = vmatpush1.msra.mxu0 0.0
    %907 = vmatprep.subr.mxu0 0.0
    %908 = vmatpush1.msra.mxu0 0.0
    %909 = vmatprep.subr.mxu0 0.0
    %910 = vmatpush1.msra.mxu0 0.0
    %911 = vmatprep.subr.mxu0 0.0
    %912 = vmatpush1.msra.mxu0 0.0
    %913 = vmatprep.subr.mxu0 0.0
    %914 = vmatpush1.msra.mxu0 0.0
    %915 = vmatprep.subr.mxu0 0.0
    %916 = vmatpush1.msra.mxu0 0.0
    %917 = vmatprep.subr.mxu0 0.0
    %918 = vmatpush1.msra.mxu0 0.0
    %919 = vmatprep.subr.mxu0 0.0
    %920 = vmatpush1.msra.mxu0 %v28
    %921 = vmatprep.subr.mxu0 0.0
    %922 = vmatpush1.msra.mxu0 %v27
    %923 = vmatprep.subr.mxu0 0.0
    %924 = vmatpush1.msra.mxu0 %v26
    %925 = vmatprep.subr.mxu0 0.0
    %926 = vmatpush1.msra.mxu0 %v25
    %927 = vmatprep.subr.mxu0 0.0
    %928 = vmatpush1.msra.mxu0 %v24
    %929 = vmatprep.subr.mxu0 0.0
    %930 = vmatpush1.msra.mxu0 %v23
    %931 = vmatprep.subr.mxu0 0.0
    %932 = vmatpush1.msra.mxu0 %v22
    %933 = vmatprep.subr.mxu0 0.0
    %934 = vmatpush1.msra.mxu0 %v21
    %935 = vmatprep.subr.mxu0 0.0
    %936 = vmatpush2.msra.mxu0 0.0
    %937 = vmatprep.subr.mxu0 0.0
    %938 = vmatpush2.msra.mxu0 0.0
    %939 = vmatprep.subr.mxu0 0.0
    %940 = vmatpush2.msra.mxu0 0.0
    %941 = vmatprep.subr.mxu0 0.0
    %942 = vmatpush2.msra.mxu0 0.0
    %943 = vmatprep.subr.mxu0 0.0
    %944 = vmatpush2.msra.mxu0 0.0
    %945 = vmatprep.subr.mxu0 0.0
    %946 = vmatpush2.msra.mxu0 0.0
    %947 = vmatprep.subr.mxu0 0.0
    %948 = vmatpush2.msra.mxu0 0.0
    %949 = vmatprep.subr.mxu0 0.0
    %950 = vmatpush2.msra.mxu0 0.0
    %951 = vmatprep.subr.mxu0 0.0
    %952 = vmatpush2.msra.mxu0 0.0
    %953 = vmatprep.subr.mxu0 0.0
    %954 = vmatpush2.msra.mxu0 0.0
    %955 = vmatprep.subr.mxu0 0.0
    %956 = vmatpush2.msra.mxu0 0.0
    %957 = vmatprep.subr.mxu0 0.0
    %958 = vmatpush2.msra.mxu0 0.0
    %959 = vmatprep.subr.mxu0 0.0
    %960 = vmatpush2.msra.mxu0 0.0
    %961 = vmatprep.subr.mxu0 0.0
    %962 = vmatpush2.msra.mxu0 0.0
    %963 = vmatprep.subr.mxu0 0.0
    %964 = vmatpush2.msra.mxu0 0.0
    %965 = vmatprep.subr.mxu0 0.0
    %966 = vmatpush2.msra.mxu0 0.0
    %967 = vmatprep.mubr.f32.mxu0 0.0
    %968 = vmatmul.mubr.f32.gmra.mxu0 %v901
    %v969 = vpop.f32.mrf.mxu0
    %v970 = vadd.f32 %v178, %v969
    %v971 = vpop.f32.mrf.mxu0
    %972 = vdwg.mxu0
    %v973 = vxor.u32 %v970, 2147483648
    %v974 = vmul.f32 %v973, 1.442695
    %v975 = vpow.pop %v974
    %v976 = vadd.f32 %v975, 1.0
    %v977 = vrcp.pop %v976
    %v978 = vmul.f32 1.0, %v977
    %v979 = vtanh.pop %v970
    %v980 = vmul.f32 %v978, %v785
    %982 = vrot.lane.b32.xlu0 %v979, 64
    %v983 = vpop.permute.xlu0 %982
    %v985 = vmul.f32 %v978, %v983
    %987 = vrot.lane.b32.xlu0 %v985, 32
    %v988 = vpop.permute.xlu0 %987
    %v990 = vadd.f32 %v980, %v988
    %v991 = vtanh.pop %v990
    %993 = vrot.lane.b32.xlu0 %v991, 64
    %v994 = vpop.permute.xlu0 %993
    %v996 = vmul.f32 %v978, %v994
    %s997 = scalar_lea.vmem [#allocation2], 8
    %v998 = vld [vmem:[%s997] sm:$0x3]
    %v999 = vsel %vm180, %v893, 0
    %1001 = vmatprep.subr.mxu0 0.0
    %1002 = vmatpush1.msra.mxu0 0.0
    %1003 = vmatprep.subr.mxu0 0.0
    %1004 = vmatpush1.msra.mxu0 0.0
    %1005 = vmatprep.subr.mxu0 0.0
    %1006 = vmatpush1.msra.mxu0 0.0
    %1007 = vmatprep.subr.mxu0 0.0
    %1008 = vmatpush1.msra.mxu0 0.0
    %1009 = vmatprep.subr.mxu0 0.0
    %1010 = vmatpush1.msra.mxu0 0.0
    %1011 = vmatprep.subr.mxu0 0.0
    %1012 = vmatpush1.msra.mxu0 0.0
    %1013 = vmatprep.subr.mxu0 0.0
    %1014 = vmatpush1.msra.mxu0 0.0
    %1015 = vmatprep.subr.mxu0 0.0
    %1016 = vmatpush1.msra.mxu0 0.0
    %1017 = vmatprep.subr.mxu0 0.0
    %1018 = vmatpush1.msra.mxu0 0.0
    %1019 = vmatprep.subr.mxu0 0.0
    %1020 = vmatpush1.msra.mxu0 0.0
    %1021 = vmatprep.subr.mxu0 0.0
    %1022 = vmatpush1.msra.mxu0 0.0
    %1023 = vmatprep.subr.mxu0 0.0
    %1024 = vmatpush1.msra.mxu0 0.0
    %1025 = vmatprep.subr.mxu0 0.0
    %1026 = vmatpush1.msra.mxu0 %v20
    %1027 = vmatprep.subr.mxu0 0.0
    %1028 = vmatpush1.msra.mxu0 %v19
    %1029 = vmatprep.subr.mxu0 0.0
    %1030 = vmatpush1.msra.mxu0 %v18
    %1031 = vmatprep.subr.mxu0 0.0
    %1032 = vmatpush1.msra.mxu0 %v17
    %1033 = vmatprep.subr.mxu0 0.0
    %1034 = vmatpush2.msra.mxu0 0.0
    %1035 = vmatprep.subr.mxu0 0.0
    %1036 = vmatpush2.msra.mxu0 0.0
    %1037 = vmatprep.subr.mxu0 0.0
    %1038 = vmatpush2.msra.mxu0 0.0
    %1039 = vmatprep.subr.mxu0 0.0
    %1040 = vmatpush2.msra.mxu0 0.0
    %1041 = vmatprep.subr.mxu0 0.0
    %1042 = vmatpush2.msra.mxu0 0.0
    %1043 = vmatprep.subr.mxu0 0.0
    %1044 = vmatpush2.msra.mxu0 0.0
    %1045 = vmatprep.subr.mxu0 0.0
    %1046 = vmatpush2.msra.mxu0 0.0
    %1047 = vmatprep.subr.mxu0 0.0
    %1048 = vmatpush2.msra.mxu0 0.0
    %1049 = vmatprep.subr.mxu0 0.0
    %1050 = vmatpush2.msra.mxu0 0.0
    %1051 = vmatprep.subr.mxu0 0.0
    %1052 = vmatpush2.msra.mxu0 0.0
    %1053 = vmatprep.subr.mxu0 0.0
    %1054 = vmatpush2.msra.mxu0 0.0
    %1055 = vmatprep.subr.mxu0 0.0
    %1056 = vmatpush2.msra.mxu0 0.0
    %1057 = vmatprep.subr.mxu0 0.0
    %1058 = vmatpush2.msra.mxu0 0.0
    %1059 = vmatprep.subr.mxu0 0.0
    %1060 = vmatpush2.msra.mxu0 0.0
    %1061 = vmatprep.subr.mxu0 0.0
    %1062 = vmatpush2.msra.mxu0 0.0
    %1063 = vmatprep.subr.mxu0 0.0
    %1064 = vmatpush2.msra.mxu0 0.0
    %1065 = vmatprep.mubr.f32.mxu0 0.0
    %1066 = vmatmul.mubr.f32.gmra.mxu0 %v999
    %v1067 = vpop.f32.mrf.mxu0
    %v1068 = vadd.f32 0.0, %v1067
    %v1069 = vpop.f32.mrf.mxu0
    %1070 = vdwg.mxu0
    %v1071 = vadd.f32 %v998, %v1068
    %v1072 = vxor.u32 %v1071, 2147483648
    %v1073 = vmul.f32 %v1072, 1.442695
    %v1074 = vpow.pop %v1073
    %v1075 = vadd.f32 %v1074, 1.0
    %v1076 = vrcp.pop %v1075
    %v1077 = vmul.f32 1.0, %v1076
    %v1078 = vtanh.pop %v1071
    %v1079 = vmul.f32 %v1077, %v884
    %1081 = vrot.lane.b32.xlu0 %v1078, 64
    %v1082 = vpop.permute.xlu0 %1081
    %v1084 = vmul.f32 %v1077, %v1082
    %1086 = vrot.lane.b32.xlu0 %v1084, 32
    %v1087 = vpop.permute.xlu0 %1086
    %v1089 = vadd.f32 %v1079, %v1087
    %v1090 = vtanh.pop %v1089
    %1092 = vrot.lane.b32.xlu0 %v1090, 64
    %v1093 = vpop.permute.xlu0 %1092
    %v1095 = vmul.f32 %v1077, %v1093
    %1097 = vrot.lane.b32.xlu0 %v1095, 32
    %v1098 = vpop.permute.xlu0 %1097
    %1101 = vrot.lane.b32.xlu0 %v996, 64
    %v1102 = vpop.permute.xlu0 %1101
    %v1104 = vsel %vm180, %v1098, %v1102
    %v1106 = vsel %vm284, %v1104, 0
    %1108 = vmatprep.subr.mxu0 0.0
    %1109 = vmatpush1.msra.mxu0 0.0
    %1110 = vmatprep.subr.mxu0 0.0
    %1111 = vmatpush1.msra.mxu0 0.0
    %1112 = vmatprep.subr.mxu0 0.0
    %1113 = vmatpush1.msra.mxu0 0.0
    %1114 = vmatprep.subr.mxu0 0.0
    %1115 = vmatpush1.msra.mxu0 0.0
    %1116 = vmatprep.subr.mxu0 0.0
    %1117 = vmatpush1.msra.mxu0 0.0
    %1118 = vmatprep.subr.mxu0 0.0
    %1119 = vmatpush1.msra.mxu0 0.0
    %1120 = vmatprep.subr.mxu0 0.0
    %1121 = vmatpush1.msra.mxu0 0.0
    %1122 = vmatprep.subr.mxu0 0.0
    %1123 = vmatpush1.msra.mxu0 0.0
    %1124 = vmatprep.subr.mxu0 0.0
    %1125 = vmatpush1.msra.mxu0 %v28
    %1126 = vmatprep.subr.mxu0 0.0
    %1127 = vmatpush1.msra.mxu0 %v27
    %1128 = vmatprep.subr.mxu0 0.0
    %1129 = vmatpush1.msra.mxu0 %v26
    %1130 = vmatprep.subr.mxu0 0.0
    %1131 = vmatpush1.msra.mxu0 %v25
    %1132 = vmatprep.subr.mxu0 0.0
    %1133 = vmatpush1.msra.mxu0 %v24
    %1134 = vmatprep.subr.mxu0 0.0
    %1135 = vmatpush1.msra.mxu0 %v23
    %1136 = vmatprep.subr.mxu0 0.0
    %1137 = vmatpush1.msra.mxu0 %v22
    %1138 = vmatprep.subr.mxu0 0.0
    %1139 = vmatpush1.msra.mxu0 %v21
    %1140 = vmatprep.subr.mxu0 0.0
    %1141 = vmatpush2.msra.mxu0 0.0
    %1142 = vmatprep.subr.mxu0 0.0
    %1143 = vmatpush2.msra.mxu0 0.0
    %1144 = vmatprep.subr.mxu0 0.0
    %1145 = vmatpush2.msra.mxu0 0.0
    %1146 = vmatprep.subr.mxu0 0.0
    %1147 = vmatpush2.msra.mxu0 0.0
    %1148 = vmatprep.subr.mxu0 0.0
    %1149 = vmatpush2.msra.mxu0 0.0
    %1150 = vmatprep.subr.mxu0 0.0
    %1151 = vmatpush2.msra.mxu0 0.0
    %1152 = vmatprep.subr.mxu0 0.0
    %1153 = vmatpush2.msra.mxu0 0.0
    %1154 = vmatprep.subr.mxu0 0.0
    %1155 = vmatpush2.msra.mxu0 0.0
    %1156 = vmatprep.subr.mxu0 0.0
    %1157 = vmatpush2.msra.mxu0 0.0
    %1158 = vmatprep.subr.mxu0 0.0
    %1159 = vmatpush2.msra.mxu0 0.0
    %1160 = vmatprep.subr.mxu0 0.0
    %1161 = vmatpush2.msra.mxu0 0.0
    %1162 = vmatprep.subr.mxu0 0.0
    %1163 = vmatpush2.msra.mxu0 0.0
    %1164 = vmatprep.subr.mxu0 0.0
    %1165 = vmatpush2.msra.mxu0 0.0
    %1166 = vmatprep.subr.mxu0 0.0
    %1167 = vmatpush2.msra.mxu0 0.0
    %1168 = vmatprep.subr.mxu0 0.0
    %1169 = vmatpush2.msra.mxu0 0.0
    %1170 = vmatprep.subr.mxu0 0.0
    %1171 = vmatpush2.msra.mxu0 0.0
    %1172 = vmatprep.mubr.f32.mxu0 0.0
    %1173 = vmatmul.mubr.f32.gmra.mxu0 %v1106
    %v1174 = vpop.f32.mrf.mxu0
    %v1175 = vadd.f32 %v178, %v1174
    %v1176 = vpop.f32.mrf.mxu0
    %1177 = vdwg.mxu0
    %v1178 = vxor.u32 %v1175, 2147483648
    %v1179 = vmul.f32 %v1178, 1.442695
    %v1180 = vpow.pop %v1179
    %v1181 = vadd.f32 %v1180, 1.0
    %v1182 = vrcp.pop %v1181
    %v1183 = vmul.f32 1.0, %v1182
    %v1184 = vtanh.pop %v1175
    %v1185 = vmul.f32 %v1183, %v990
    %1187 = vrot.lane.b32.xlu0 %v1184, 64
    %v1188 = vpop.permute.xlu0 %1187
    %v1190 = vmul.f32 %v1183, %v1188
    %1192 = vrot.lane.b32.xlu0 %v1190, 32
    %v1193 = vpop.permute.xlu0 %1192
    %v1195 = vadd.f32 %v1185, %v1193
    %v1196 = vtanh.pop %v1195
    %1198 = vrot.lane.b32.xlu0 %v1196, 64
    %v1199 = vpop.permute.xlu0 %1198
    %v1201 = vmul.f32 %v1183, %v1199
    %s1202 = scalar_lea.vmem [#allocation2], 10
    %v1203 = vld [vmem:[%s1202] sm:$0x3]
    %v1204 = vsel %vm180, %v1098, 0
    %1206 = vmatprep.subr.mxu0 0.0
    %1207 = vmatpush1.msra.mxu0 0.0
    %1208 = vmatprep.subr.mxu0 0.0
    %1209 = vmatpush1.msra.mxu0 0.0
    %1210 = vmatprep.subr.mxu0 0.0
    %1211 = vmatpush1.msra.mxu0 0.0
    %1212 = vmatprep.subr.mxu0 0.0
    %1213 = vmatpush1.msra.mxu0 0.0
    %1214 = vmatprep.subr.mxu0 0.0
    %1215 = vmatpush1.msra.mxu0 0.0
    %1216 = vmatprep.subr.mxu0 0.0
    %1217 = vmatpush1.msra.mxu0 0.0
    %1218 = vmatprep.subr.mxu0 0.0
    %1219 = vmatpush1.msra.mxu0 0.0
    %1220 = vmatprep.subr.mxu0 0.0
    %1221 = vmatpush1.msra.mxu0 0.0
    %1222 = vmatprep.subr.mxu0 0.0
    %1223 = vmatpush1.msra.mxu0 0.0
    %1224 = vmatprep.subr.mxu0 0.0
    %1225 = vmatpush1.msra.mxu0 0.0
    %1226 = vmatprep.subr.mxu0 0.0
    %1227 = vmatpush1.msra.mxu0 0.0
    %1228 = vmatprep.subr.mxu0 0.0
    %1229 = vmatpush1.msra.mxu0 0.0
    %1230 = vmatprep.subr.mxu0 0.0
    %1231 = vmatpush1.msra.mxu0 %v20
    %1232 = vmatprep.subr.mxu0 0.0
    %1233 = vmatpush1.msra.mxu0 %v19
    %1234 = vmatprep.subr.mxu0 0.0
    %1235 = vmatpush1.msra.mxu0 %v18
    %1236 = vmatprep.subr.mxu0 0.0
    %1237 = vmatpush1.msra.mxu0 %v17
    %1238 = vmatprep.subr.mxu0 0.0
    %1239 = vmatpush2.msra.mxu0 0.0
    %1240 = vmatprep.subr.mxu0 0.0
    %1241 = vmatpush2.msra.mxu0 0.0
    %1242 = vmatprep.subr.mxu0 0.0
    %1243 = vmatpush2.msra.mxu0 0.0
    %1244 = vmatprep.subr.mxu0 0.0
    %1245 = vmatpush2.msra.mxu0 0.0
    %1246 = vmatprep.subr.mxu0 0.0
    %1247 = vmatpush2.msra.mxu0 0.0
    %1248 = vmatprep.subr.mxu0 0.0
    %1249 = vmatpush2.msra.mxu0 0.0
    %1250 = vmatprep.subr.mxu0 0.0
    %1251 = vmatpush2.msra.mxu0 0.0
    %1252 = vmatprep.subr.mxu0 0.0
    %1253 = vmatpush2.msra.mxu0 0.0
    %1254 = vmatprep.subr.mxu0 0.0
    %1255 = vmatpush2.msra.mxu0 0.0
    %1256 = vmatprep.subr.mxu0 0.0
    %1257 = vmatpush2.msra.mxu0 0.0
    %1258 = vmatprep.subr.mxu0 0.0
    %1259 = vmatpush2.msra.mxu0 0.0
    %1260 = vmatprep.subr.mxu0 0.0
    %1261 = vmatpush2.msra.mxu0 0.0
    %1262 = vmatprep.subr.mxu0 0.0
    %1263 = vmatpush2.msra.mxu0 0.0
    %1264 = vmatprep.subr.mxu0 0.0
    %1265 = vmatpush2.msra.mxu0 0.0
    %1266 = vmatprep.subr.mxu0 0.0
    %1267 = vmatpush2.msra.mxu0 0.0
    %1268 = vmatprep.subr.mxu0 0.0
    %1269 = vmatpush2.msra.mxu0 0.0
    %1270 = vmatprep.mubr.f32.mxu0 0.0
    %1271 = vmatmul.mubr.f32.gmra.mxu0 %v1204
    %v1272 = vpop.f32.mrf.mxu0
    %v1273 = vadd.f32 0.0, %v1272
    %v1274 = vpop.f32.mrf.mxu0
    %1275 = vdwg.mxu0
    %v1276 = vadd.f32 %v1203, %v1273
    %v1277 = vxor.u32 %v1276, 2147483648
    %v1278 = vmul.f32 %v1277, 1.442695
    %v1279 = vpow.pop %v1278
    %v1280 = vadd.f32 %v1279, 1.0
    %v1281 = vrcp.pop %v1280
    %v1282 = vmul.f32 1.0, %v1281
    %v1283 = vtanh.pop %v1276
    %v1284 = vmul.f32 %v1282, %v1089
    %1286 = vrot.lane.b32.xlu0 %v1283, 64
    %v1287 = vpop.permute.xlu0 %1286
    %v1289 = vmul.f32 %v1282, %v1287
    %1291 = vrot.lane.b32.xlu0 %v1289, 32
    %v1292 = vpop.permute.xlu0 %1291
    %v1294 = vadd.f32 %v1284, %v1292
    %v1295 = vtanh.pop %v1294
    %1297 = vrot.lane.b32.xlu0 %v1295, 64
    %v1298 = vpop.permute.xlu0 %1297
    %v1300 = vmul.f32 %v1282, %v1298
    %1302 = vrot.lane.b32.xlu0 %v1300, 32
    %v1303 = vpop.permute.xlu0 %1302
    %1306 = vrot.lane.b32.xlu0 %v1201, 64
    %v1307 = vpop.permute.xlu0 %1306
    %v1309 = vsel %vm180, %v1303, %v1307
    %v1311 = vsel %vm284, %v1309, 0
    %1313 = vmatprep.subr.mxu0 0.0
    %1314 = vmatpush1.msra.mxu0 0.0
    %1315 = vmatprep.subr.mxu0 0.0
    %1316 = vmatpush1.msra.mxu0 0.0
    %1317 = vmatprep.subr.mxu0 0.0
    %1318 = vmatpush1.msra.mxu0 0.0
    %1319 = vmatprep.subr.mxu0 0.0
    %1320 = vmatpush1.msra.mxu0 0.0
    %1321 = vmatprep.subr.mxu0 0.0
    %1322 = vmatpush1.msra.mxu0 0.0
    %1323 = vmatprep.subr.mxu0 0.0
    %1324 = vmatpush1.msra.mxu0 0.0
    %1325 = vmatprep.subr.mxu0 0.0
    %1326 = vmatpush1.msra.mxu0 0.0
    %1327 = vmatprep.subr.mxu0 0.0
    %1328 = vmatpush1.msra.mxu0 0.0
    %1329 = vmatprep.subr.mxu0 0.0
    %1330 = vmatpush1.msra.mxu0 %v28
    %1331 = vmatprep.subr.mxu0 0.0
    %1332 = vmatpush1.msra.mxu0 %v27
    %1333 = vmatprep.subr.mxu0 0.0
    %1334 = vmatpush1.msra.mxu0 %v26
    %1335 = vmatprep.subr.mxu0 0.0
    %1336 = vmatpush1.msra.mxu0 %v25
    %1337 = vmatprep.subr.mxu0 0.0
    %1338 = vmatpush1.msra.mxu0 %v24
    %1339 = vmatprep.subr.mxu0 0.0
    %1340 = vmatpush1.msra.mxu0 %v23
    %1341 = vmatprep.subr.mxu0 0.0
    %1342 = vmatpush1.msra.mxu0 %v22
    %1343 = vmatprep.subr.mxu0 0.0
    %1344 = vmatpush1.msra.mxu0 %v21
    %1345 = vmatprep.subr.mxu0 0.0
    %1346 = vmatpush2.msra.mxu0 0.0
    %1347 = vmatprep.subr.mxu0 0.0
    %1348 = vmatpush2.msra.mxu0 0.0
    %1349 = vmatprep.subr.mxu0 0.0
    %1350 = vmatpush2.msra.mxu0 0.0
    %1351 = vmatprep.subr.mxu0 0.0
    %1352 = vmatpush2.msra.mxu0 0.0
    %1353 = vmatprep.subr.mxu0 0.0
    %1354 = vmatpush2.msra.mxu0 0.0
    %1355 = vmatprep.subr.mxu0 0.0
    %1356 = vmatpush2.msra.mxu0 0.0
    %1357 = vmatprep.subr.mxu0 0.0
    %1358 = vmatpush2.msra.mxu0 0.0
    %1359 = vmatprep.subr.mxu0 0.0
    %1360 = vmatpush2.msra.mxu0 0.0
    %1361 = vmatprep.subr.mxu0 0.0
    %1362 = vmatpush2.msra.mxu0 0.0
    %1363 = vmatprep.subr.mxu0 0.0
    %1364 = vmatpush2.msra.mxu0 0.0
    %1365 = vmatprep.subr.mxu0 0.0
    %1366 = vmatpush2.msra.mxu0 0.0
    %1367 = vmatprep.subr.mxu0 0.0
    %1368 = vmatpush2.msra.mxu0 0.0
    %1369 = vmatprep.subr.mxu0 0.0
    %1370 = vmatpush2.msra.mxu0 0.0
    %1371 = vmatprep.subr.mxu0 0.0
    %1372 = vmatpush2.msra.mxu0 0.0
    %1373 = vmatprep.subr.mxu0 0.0
    %1374 = vmatpush2.msra.mxu0 0.0
    %1375 = vmatprep.subr.mxu0 0.0
    %1376 = vmatpush2.msra.mxu0 0.0
    %1377 = vmatprep.mubr.f32.mxu0 0.0
    %1378 = vmatmul.mubr.f32.gmra.mxu0 %v1311
    %v1379 = vpop.f32.mrf.mxu0
    %v1380 = vadd.f32 %v178, %v1379
    %v1381 = vpop.f32.mrf.mxu0
    %1382 = vdwg.mxu0
    %v1383 = vxor.u32 %v1380, 2147483648
    %v1384 = vmul.f32 %v1383, 1.442695
    %v1385 = vpow.pop %v1384
    %v1386 = vadd.f32 %v1385, 1.0
    %v1387 = vrcp.pop %v1386
    %v1388 = vmul.f32 1.0, %v1387
    %v1389 = vtanh.pop %v1380
    %v1390 = vmul.f32 %v1388, %v1195
    %1392 = vrot.lane.b32.xlu0 %v1389, 64
    %v1393 = vpop.permute.xlu0 %1392
    %v1395 = vmul.f32 %v1388, %v1393
    %1397 = vrot.lane.b32.xlu0 %v1395, 32
    %v1398 = vpop.permute.xlu0 %1397
    %v1400 = vadd.f32 %v1390, %v1398
    %v1401 = vtanh.pop %v1400
    %1403 = vrot.lane.b32.xlu0 %v1401, 64
    %v1404 = vpop.permute.xlu0 %1403
    %v1406 = vmul.f32 %v1388, %v1404
    %s1407 = scalar_lea.vmem [#allocation2], 12
    %v1408 = vld [vmem:[%s1407] sm:$0x3]
    %v1409 = vsel %vm180, %v1303, 0
    %1411 = vmatprep.subr.mxu0 0.0
    %1412 = vmatpush1.msra.mxu0 0.0
    %1413 = vmatprep.subr.mxu0 0.0
    %1414 = vmatpush1.msra.mxu0 0.0
    %1415 = vmatprep.subr.mxu0 0.0
    %1416 = vmatpush1.msra.mxu0 0.0
    %1417 = vmatprep.subr.mxu0 0.0
    %1418 = vmatpush1.msra.mxu0 0.0
    %1419 = vmatprep.subr.mxu0 0.0
    %1420 = vmatpush1.msra.mxu0 0.0
    %1421 = vmatprep.subr.mxu0 0.0
    %1422 = vmatpush1.msra.mxu0 0.0
    %1423 = vmatprep.subr.mxu0 0.0
    %1424 = vmatpush1.msra.mxu0 0.0
    %1425 = vmatprep.subr.mxu0 0.0
    %1426 = vmatpush1.msra.mxu0 0.0
    %1427 = vmatprep.subr.mxu0 0.0
    %1428 = vmatpush1.msra.mxu0 0.0
    %1429 = vmatprep.subr.mxu0 0.0
    %1430 = vmatpush1.msra.mxu0 0.0
    %1431 = vmatprep.subr.mxu0 0.0
    %1432 = vmatpush1.msra.mxu0 0.0
    %1433 = vmatprep.subr.mxu0 0.0
    %1434 = vmatpush1.msra.mxu0 0.0
    %1435 = vmatprep.subr.mxu0 0.0
    %1436 = vmatpush1.msra.mxu0 %v20
    %1437 = vmatprep.subr.mxu0 0.0
    %1438 = vmatpush1.msra.mxu0 %v19
    %1439 = vmatprep.subr.mxu0 0.0
    %1440 = vmatpush1.msra.mxu0 %v18
    %1441 = vmatprep.subr.mxu0 0.0
    %1442 = vmatpush1.msra.mxu0 %v17
    %1443 = vmatprep.subr.mxu0 0.0
    %1444 = vmatpush2.msra.mxu0 0.0
    %1445 = vmatprep.subr.mxu0 0.0
    %1446 = vmatpush2.msra.mxu0 0.0
    %1447 = vmatprep.subr.mxu0 0.0
    %1448 = vmatpush2.msra.mxu0 0.0
    %1449 = vmatprep.subr.mxu0 0.0
    %1450 = vmatpush2.msra.mxu0 0.0
    %1451 = vmatprep.subr.mxu0 0.0
    %1452 = vmatpush2.msra.mxu0 0.0
    %1453 = vmatprep.subr.mxu0 0.0
    %1454 = vmatpush2.msra.mxu0 0.0
    %1455 = vmatprep.subr.mxu0 0.0
    %1456 = vmatpush2.msra.mxu0 0.0
    %1457 = vmatprep.subr.mxu0 0.0
    %1458 = vmatpush2.msra.mxu0 0.0
    %1459 = vmatprep.subr.mxu0 0.0
    %1460 = vmatpush2.msra.mxu0 0.0
    %1461 = vmatprep.subr.mxu0 0.0
    %1462 = vmatpush2.msra.mxu0 0.0
    %1463 = vmatprep.subr.mxu0 0.0
    %1464 = vmatpush2.msra.mxu0 0.0
    %1465 = vmatprep.subr.mxu0 0.0
    %1466 = vmatpush2.msra.mxu0 0.0
    %1467 = vmatprep.subr.mxu0 0.0
    %1468 = vmatpush2.msra.mxu0 0.0
    %1469 = vmatprep.subr.mxu0 0.0
    %1470 = vmatpush2.msra.mxu0 0.0
    %1471 = vmatprep.subr.mxu0 0.0
    %1472 = vmatpush2.msra.mxu0 0.0
    %1473 = vmatprep.subr.mxu0 0.0
    %1474 = vmatpush2.msra.mxu0 0.0
    %1475 = vmatprep.mubr.f32.mxu0 0.0
    %1476 = vmatmul.mubr.f32.gmra.mxu0 %v1409
    %v1477 = vpop.f32.mrf.mxu0
    %v1478 = vadd.f32 0.0, %v1477
    %v1479 = vpop.f32.mrf.mxu0
    %1480 = vdwg.mxu0
    %v1481 = vadd.f32 %v1408, %v1478
    %v1482 = vxor.u32 %v1481, 2147483648
    %v1483 = vmul.f32 %v1482, 1.442695
    %v1484 = vpow.pop %v1483
    %v1485 = vadd.f32 %v1484, 1.0
    %v1486 = vrcp.pop %v1485
    %v1487 = vmul.f32 1.0, %v1486
    %v1488 = vtanh.pop %v1481
    %v1489 = vmul.f32 %v1487, %v1294
    %1491 = vrot.lane.b32.xlu0 %v1488, 64
    %v1492 = vpop.permute.xlu0 %1491
    %v1494 = vmul.f32 %v1487, %v1492
    %1496 = vrot.lane.b32.xlu0 %v1494, 32
    %v1497 = vpop.permute.xlu0 %1496
    %v1499 = vadd.f32 %v1489, %v1497
    %v1500 = vtanh.pop %v1499
    %1502 = vrot.lane.b32.xlu0 %v1500, 64
    %v1503 = vpop.permute.xlu0 %1502
    %v1505 = vmul.f32 %v1487, %v1503
    %1507 = vrot.lane.b32.xlu0 %v1505, 32
    %v1508 = vpop.permute.xlu0 %1507
    %1511 = vrot.lane.b32.xlu0 %v1406, 64
    %v1512 = vpop.permute.xlu0 %1511
    %v1514 = vsel %vm180, %v1508, %v1512
    %v1516 = vsel %vm284, %v1514, 0
    %1518 = vmatprep.subr.mxu0 0.0
    %1519 = vmatpush1.msra.mxu0 0.0
    %1520 = vmatprep.subr.mxu0 0.0
    %1521 = vmatpush1.msra.mxu0 0.0
    %1522 = vmatprep.subr.mxu0 0.0
    %1523 = vmatpush1.msra.mxu0 0.0
    %1524 = vmatprep.subr.mxu0 0.0
    %1525 = vmatpush1.msra.mxu0 0.0
    %1526 = vmatprep.subr.mxu0 0.0
    %1527 = vmatpush1.msra.mxu0 0.0
    %1528 = vmatprep.subr.mxu0 0.0
    %1529 = vmatpush1.msra.mxu0 0.0
    %1530 = vmatprep.subr.mxu0 0.0
    %1531 = vmatpush1.msra.mxu0 0.0
    %1532 = vmatprep.subr.mxu0 0.0
    %1533 = vmatpush1.msra.mxu0 0.0
    %1534 = vmatprep.subr.mxu0 0.0
    %1535 = vmatpush1.msra.mxu0 %v28
    %1536 = vmatprep.subr.mxu0 0.0
    %1537 = vmatpush1.msra.mxu0 %v27
    %1538 = vmatprep.subr.mxu0 0.0
    %1539 = vmatpush1.msra.mxu0 %v26
    %1540 = vmatprep.subr.mxu0 0.0
    %1541 = vmatpush1.msra.mxu0 %v25
    %1542 = vmatprep.subr.mxu0 0.0
    %1543 = vmatpush1.msra.mxu0 %v24
    %1544 = vmatprep.subr.mxu0 0.0
    %1545 = vmatpush1.msra.mxu0 %v23
    %1546 = vmatprep.subr.mxu0 0.0
    %1547 = vmatpush1.msra.mxu0 %v22
    %1548 = vmatprep.subr.mxu0 0.0
    %1549 = vmatpush1.msra.mxu0 %v21
    %1550 = vmatprep.subr.mxu0 0.0
    %1551 = vmatpush2.msra.mxu0 0.0
    %1552 = vmatprep.subr.mxu0 0.0
    %1553 = vmatpush2.msra.mxu0 0.0
    %1554 = vmatprep.subr.mxu0 0.0
    %1555 = vmatpush2.msra.mxu0 0.0
    %1556 = vmatprep.subr.mxu0 0.0
    %1557 = vmatpush2.msra.mxu0 0.0
    %1558 = vmatprep.subr.mxu0 0.0
    %1559 = vmatpush2.msra.mxu0 0.0
    %1560 = vmatprep.subr.mxu0 0.0
    %1561 = vmatpush2.msra.mxu0 0.0
    %1562 = vmatprep.subr.mxu0 0.0
    %1563 = vmatpush2.msra.mxu0 0.0
    %1564 = vmatprep.subr.mxu0 0.0
    %1565 = vmatpush2.msra.mxu0 0.0
    %1566 = vmatprep.subr.mxu0 0.0
    %1567 = vmatpush2.msra.mxu0 0.0
    %1568 = vmatprep.subr.mxu0 0.0
    %1569 = vmatpush2.msra.mxu0 0.0
    %1570 = vmatprep.subr.mxu0 0.0
    %1571 = vmatpush2.msra.mxu0 0.0
    %1572 = vmatprep.subr.mxu0 0.0
    %1573 = vmatpush2.msra.mxu0 0.0
    %1574 = vmatprep.subr.mxu0 0.0
    %1575 = vmatpush2.msra.mxu0 0.0
    %1576 = vmatprep.subr.mxu0 0.0
    %1577 = vmatpush2.msra.mxu0 0.0
    %1578 = vmatprep.subr.mxu0 0.0
    %1579 = vmatpush2.msra.mxu0 0.0
    %1580 = vmatprep.subr.mxu0 0.0
    %1581 = vmatpush2.msra.mxu0 0.0
    %1582 = vmatprep.mubr.f32.mxu0 0.0
    %1583 = vmatmul.mubr.f32.gmra.mxu0 %v1516
    %v1584 = vpop.f32.mrf.mxu0
    %v1585 = vadd.f32 %v178, %v1584
    %v1586 = vpop.f32.mrf.mxu0
    %1587 = vdwg.mxu0
    %v1588 = vxor.u32 %v1585, 2147483648
    %v1589 = vmul.f32 %v1588, 1.442695
    %v1590 = vpow.pop %v1589
    %v1591 = vadd.f32 %v1590, 1.0
    %v1592 = vrcp.pop %v1591
    %v1593 = vmul.f32 1.0, %v1592
    %v1594 = vtanh.pop %v1585
    %v1595 = vmul.f32 %v1593, %v1400
    %1597 = vrot.lane.b32.xlu0 %v1594, 64
    %v1598 = vpop.permute.xlu0 %1597
    %v1600 = vmul.f32 %v1593, %v1598
    %1602 = vrot.lane.b32.xlu0 %v1600, 32
    %v1603 = vpop.permute.xlu0 %1602
    %v1605 = vadd.f32 %v1595, %v1603
    %v1606 = vtanh.pop %v1605
    %1608 = vrot.lane.b32.xlu0 %v1606, 64
    %v1609 = vpop.permute.xlu0 %1608
    %v1611 = vmul.f32 %v1593, %v1609
    %s1612 = scalar_lea.vmem [#allocation2], 14
    %v1613 = vld [vmem:[%s1612] sm:$0x3]
    %v1614 = vsel %vm180, %v1508, 0
    %1616 = vmatprep.subr.mxu0 0.0
    %1617 = vmatpush1.msra.mxu0 0.0
    %1618 = vmatprep.subr.mxu0 0.0
    %1619 = vmatpush1.msra.mxu0 0.0
    %1620 = vmatprep.subr.mxu0 0.0
    %1621 = vmatpush1.msra.mxu0 0.0
    %1622 = vmatprep.subr.mxu0 0.0
    %1623 = vmatpush1.msra.mxu0 0.0
    %1624 = vmatprep.subr.mxu0 0.0
    %1625 = vmatpush1.msra.mxu0 0.0
    %1626 = vmatprep.subr.mxu0 0.0
    %1627 = vmatpush1.msra.mxu0 0.0
    %1628 = vmatprep.subr.mxu0 0.0
    %1629 = vmatpush1.msra.mxu0 0.0
    %1630 = vmatprep.subr.mxu0 0.0
    %1631 = vmatpush1.msra.mxu0 0.0
    %1632 = vmatprep.subr.mxu0 0.0
    %1633 = vmatpush1.msra.mxu0 0.0
    %1634 = vmatprep.subr.mxu0 0.0
    %1635 = vmatpush1.msra.mxu0 0.0
    %1636 = vmatprep.subr.mxu0 0.0
    %1637 = vmatpush1.msra.mxu0 0.0
    %1638 = vmatprep.subr.mxu0 0.0
    %1639 = vmatpush1.msra.mxu0 0.0
    %1640 = vmatprep.subr.mxu0 0.0
    %1641 = vmatpush1.msra.mxu0 %v20
    %1642 = vmatprep.subr.mxu0 0.0
    %1643 = vmatpush1.msra.mxu0 %v19
    %1644 = vmatprep.subr.mxu0 0.0
    %1645 = vmatpush1.msra.mxu0 %v18
    %1646 = vmatprep.subr.mxu0 0.0
    %1647 = vmatpush1.msra.mxu0 %v17
    %1648 = vmatprep.subr.mxu0 0.0
    %1649 = vmatpush2.msra.mxu0 0.0
    %1650 = vmatprep.subr.mxu0 0.0
    %1651 = vmatpush2.msra.mxu0 0.0
    %1652 = vmatprep.subr.mxu0 0.0
    %1653 = vmatpush2.msra.mxu0 0.0
    %1654 = vmatprep.subr.mxu0 0.0
    %1655 = vmatpush2.msra.mxu0 0.0
    %1656 = vmatprep.subr.mxu0 0.0
    %1657 = vmatpush2.msra.mxu0 0.0
    %1658 = vmatprep.subr.mxu0 0.0
    %1659 = vmatpush2.msra.mxu0 0.0
    %1660 = vmatprep.subr.mxu0 0.0
    %1661 = vmatpush2.msra.mxu0 0.0
    %1662 = vmatprep.subr.mxu0 0.0
    %1663 = vmatpush2.msra.mxu0 0.0
    %1664 = vmatprep.subr.mxu0 0.0
    %1665 = vmatpush2.msra.mxu0 0.0
    %1666 = vmatprep.subr.mxu0 0.0
    %1667 = vmatpush2.msra.mxu0 0.0
    %1668 = vmatprep.subr.mxu0 0.0
    %1669 = vmatpush2.msra.mxu0 0.0
    %1670 = vmatprep.subr.mxu0 0.0
    %1671 = vmatpush2.msra.mxu0 0.0
    %1672 = vmatprep.subr.mxu0 0.0
    %1673 = vmatpush2.msra.mxu0 0.0
    %1674 = vmatprep.subr.mxu0 0.0
    %1675 = vmatpush2.msra.mxu0 0.0
    %1676 = vmatprep.subr.mxu0 0.0
    %1677 = vmatpush2.msra.mxu0 0.0
    %1678 = vmatprep.subr.mxu0 0.0
    %1679 = vmatpush2.msra.mxu0 0.0
    %1680 = vmatprep.mubr.f32.mxu0 0.0
    %1681 = vmatmul.mubr.f32.gmra.mxu0 %v1614
    %v1682 = vpop.f32.mrf.mxu0
    %v1683 = vadd.f32 0.0, %v1682
    %v1684 = vpop.f32.mrf.mxu0
    %1685 = vdwg.mxu0
    %v1686 = vadd.f32 %v1613, %v1683
    %v1687 = vxor.u32 %v1686, 2147483648
    %v1688 = vmul.f32 %v1687, 1.442695
    %v1689 = vpow.pop %v1688
    %v1690 = vadd.f32 %v1689, 1.0
    %v1691 = vrcp.pop %v1690
    %v1692 = vmul.f32 1.0, %v1691
    %v1693 = vtanh.pop %v1686
    %v1694 = vmul.f32 %v1692, %v1499
    %1696 = vrot.lane.b32.xlu0 %v1693, 64
    %v1697 = vpop.permute.xlu0 %1696
    %v1699 = vmul.f32 %v1692, %v1697
    %1701 = vrot.lane.b32.xlu0 %v1699, 32
    %v1702 = vpop.permute.xlu0 %1701
    %v1704 = vadd.f32 %v1694, %v1702
    %v1705 = vtanh.pop %v1704
    %1707 = vrot.lane.b32.xlu0 %v1705, 64
    %v1708 = vpop.permute.xlu0 %1707
    %v1710 = vmul.f32 %v1692, %v1708
    %1712 = vrot.lane.b32.xlu0 %v1710, 32
    %v1713 = vpop.permute.xlu0 %1712
    %1716 = vrot.lane.b32.xlu0 %v1611, 64
    %v1717 = vpop.permute.xlu0 %1716
    %v1719 = vsel %vm180, %v1713, %v1717
    %v1721 = vsel %vm284, %v1719, 0
    %1723 = vmatprep.subr.mxu0 0.0
    %1724 = vmatpush1.msra.mxu0 0.0
    %1725 = vmatprep.subr.mxu0 0.0
    %1726 = vmatpush1.msra.mxu0 0.0
    %1727 = vmatprep.subr.mxu0 0.0
    %1728 = vmatpush1.msra.mxu0 0.0
    %1729 = vmatprep.subr.mxu0 0.0
    %1730 = vmatpush1.msra.mxu0 0.0
    %1731 = vmatprep.subr.mxu0 0.0
    %1732 = vmatpush1.msra.mxu0 0.0
    %1733 = vmatprep.subr.mxu0 0.0
    %1734 = vmatpush1.msra.mxu0 0.0
    %1735 = vmatprep.subr.mxu0 0.0
    %1736 = vmatpush1.msra.mxu0 0.0
    %1737 = vmatprep.subr.mxu0 0.0
    %1738 = vmatpush1.msra.mxu0 0.0
    %1739 = vmatprep.subr.mxu0 0.0
    %1740 = vmatpush1.msra.mxu0 %v28
    %1741 = vmatprep.subr.mxu0 0.0
    %1742 = vmatpush1.msra.mxu0 %v27
    %1743 = vmatprep.subr.mxu0 0.0
    %1744 = vmatpush1.msra.mxu0 %v26
    %1745 = vmatprep.subr.mxu0 0.0
    %1746 = vmatpush1.msra.mxu0 %v25
    %1747 = vmatprep.subr.mxu0 0.0
    %1748 = vmatpush1.msra.mxu0 %v24
    %1749 = vmatprep.subr.mxu0 0.0
    %1750 = vmatpush1.msra.mxu0 %v23
    %1751 = vmatprep.subr.mxu0 0.0
    %1752 = vmatpush1.msra.mxu0 %v22
    %1753 = vmatprep.subr.mxu0 0.0
    %1754 = vmatpush1.msra.mxu0 %v21
    %1755 = vmatprep.subr.mxu0 0.0
    %1756 = vmatpush2.msra.mxu0 0.0
    %1757 = vmatprep.subr.mxu0 0.0
    %1758 = vmatpush2.msra.mxu0 0.0
    %1759 = vmatprep.subr.mxu0 0.0
    %1760 = vmatpush2.msra.mxu0 0.0
    %1761 = vmatprep.subr.mxu0 0.0
    %1762 = vmatpush2.msra.mxu0 0.0
    %1763 = vmatprep.subr.mxu0 0.0
    %1764 = vmatpush2.msra.mxu0 0.0
    %1765 = vmatprep.subr.mxu0 0.0
    %1766 = vmatpush2.msra.mxu0 0.0
    %1767 = vmatprep.subr.mxu0 0.0
    %1768 = vmatpush2.msra.mxu0 0.0
    %1769 = vmatprep.subr.mxu0 0.0
    %1770 = vmatpush2.msra.mxu0 0.0
    %1771 = vmatprep.subr.mxu0 0.0
    %1772 = vmatpush2.msra.mxu0 0.0
    %1773 = vmatprep.subr.mxu0 0.0
    %1774 = vmatpush2.msra.mxu0 0.0
    %1775 = vmatprep.subr.mxu0 0.0
    %1776 = vmatpush2.msra.mxu0 0.0
    %1777 = vmatprep.subr.mxu0 0.0
    %1778 = vmatpush2.msra.mxu0 0.0
    %1779 = vmatprep.subr.mxu0 0.0
    %1780 = vmatpush2.msra.mxu0 0.0
    %1781 = vmatprep.subr.mxu0 0.0
    %1782 = vmatpush2.msra.mxu0 0.0
    %1783 = vmatprep.subr.mxu0 0.0
    %1784 = vmatpush2.msra.mxu0 0.0
    %1785 = vmatprep.subr.mxu0 0.0
    %1786 = vmatpush2.msra.mxu0 0.0
    %1787 = vmatprep.mubr.f32.mxu0 0.0
    %1788 = vmatmul.mubr.f32.gmra.mxu0 %v1721
    %v1789 = vpop.f32.mrf.mxu0
    %v1790 = vadd.f32 %v178, %v1789
    %v1791 = vpop.f32.mrf.mxu0
    %1792 = vdwg.mxu0
    %v1793 = vxor.u32 %v1790, 2147483648
    %v1794 = vmul.f32 %v1793, 1.442695
    %v1795 = vpow.pop %v1794
    %v1796 = vadd.f32 %v1795, 1.0
    %v1797 = vrcp.pop %v1796
    %v1798 = vmul.f32 1.0, %v1797
    %v1799 = vtanh.pop %v1790
    %v1800 = vmul.f32 %v1798, %v1605
    %1802 = vrot.lane.b32.xlu0 %v1799, 64
    %v1803 = vpop.permute.xlu0 %1802
    %v1805 = vmul.f32 %v1798, %v1803
    %1807 = vrot.lane.b32.xlu0 %v1805, 32
    %v1808 = vpop.permute.xlu0 %1807
    %v1810 = vadd.f32 %v1800, %v1808
    %v1811 = vtanh.pop %v1810
    %1813 = vrot.lane.b32.xlu0 %v1811, 64
    %v1814 = vpop.permute.xlu0 %1813
    %v1816 = vmul.f32 %v1798, %v1814
    %1818 = vrot.lane.b32.xlu0 %v1816, 96
    %v1819 = vpop.permute.xlu0 %1818
    %1822 = vrot.lane.b32.xlu0 %v1810, 64
    %v1823 = vpop.permute.xlu0 %1822
    %v1825 = vsel %vm180, %v1713, %v1704
    %v1826 = vsel %vm284, %v1825, %v1819
    %vm1827 = vcmask 785408
    %v1828 = vsel %vm1827, %v1826, %v1823
    %v1829 = vtanh.pop %v1828
    %v1830 = vld [vmem:[%s2] sm:$0xff]
    %v1831 = vld [vmem:[%s2 + $0x8] sm:$0xff]
    %v1832 = vld [vmem:[%s2 + $0x10] sm:$0xff]
    %v1833 = vld [vmem:[%s2 + $0x18] sm:$0xff]
    %v1834 = vld [vmem:[%s2 + $0x20] sm:$0xff]
    %v1835 = vld [vmem:[%s2 + $0x28] sm:$0xff]
    %v1836 = vld [vmem:[%s2 + $0x30] sm:$0xff]
    %v1837 = vld [vmem:[%s2 + $0x38] sm:$0xff]
    %v1838 = vld [vmem:[%s2 + $0x40] sm:$0xff]
    %v1839 = vld [vmem:[%s2 + $0x48] sm:$0xff]
    %v1840 = vld [vmem:[%s2 + $0x50] sm:$0xff]
    %v1841 = vld [vmem:[%s2 + $0x58] sm:$0xff]
    %v1842 = vld [vmem:[%s2 + $0x60] sm:$0xff]
    %v1843 = vld [vmem:[%s2 + $0x68] sm:$0xff]
    %v1844 = vld [vmem:[%s2 + $0x70] sm:$0xff]
    %v1845 = vld [vmem:[%s2 + $0x78] sm:$0xff]
    %v1846 = vld [vmem:[%s2 + $0x80] sm:$0x1]
    %v1847 = vlaneseq
    %v1848 = vshrl.u32 %v1847, 7
    %v1849 = vsub.s32 0, %v1848
    %v1850 = vrot.slane %v1846, %v1849
    %1851 = vmatprep.subr.mxu0 0.0
    %1852 = vmatpush1.msra.mxu0 %v1845
    %1853 = vmatprep.subr.mxu0 0.0
    %1854 = vmatpush1.msra.mxu0 %v1844
    %1855 = vmatprep.subr.mxu0 0.0
    %1856 = vmatpush1.msra.mxu0 %v1843
    %1857 = vmatprep.subr.mxu0 0.0
    %1858 = vmatpush1.msra.mxu0 %v1842
    %1859 = vmatprep.subr.mxu0 0.0
    %1860 = vmatpush1.msra.mxu0 %v1841
    %1861 = vmatprep.subr.mxu0 0.0
    %1862 = vmatpush1.msra.mxu0 %v1840
    %1863 = vmatprep.subr.mxu0 0.0
    %1864 = vmatpush1.msra.mxu0 %v1839
    %1865 = vmatprep.subr.mxu0 0.0
    %1866 = vmatpush1.msra.mxu0 %v1838
    %1867 = vmatprep.subr.mxu0 0.0
    %1868 = vmatpush1.msra.mxu0 %v1837
    %1869 = vmatprep.subr.mxu0 0.0
    %1870 = vmatpush1.msra.mxu0 %v1836
    %1871 = vmatprep.subr.mxu0 0.0
    %1872 = vmatpush1.msra.mxu0 %v1835
    %1873 = vmatprep.subr.mxu0 0.0
    %1874 = vmatpush1.msra.mxu0 %v1834
    %1875 = vmatprep.subr.mxu0 0.0
    %1876 = vmatpush1.msra.mxu0 %v1833
    %1877 = vmatprep.subr.mxu0 0.0
    %1878 = vmatpush1.msra.mxu0 %v1832
    %1879 = vmatprep.subr.mxu0 0.0
    %1880 = vmatpush1.msra.mxu0 %v1831
    %1881 = vmatprep.subr.mxu0 0.0
    %1882 = vmatpush1.msra.mxu0 %v1830
    %1883 = vmatprep.subr.mxu0 0.0
    %1884 = vmatpush2.msra.mxu0 0.0
    %1885 = vmatprep.subr.mxu0 0.0
    %1886 = vmatpush2.msra.mxu0 0.0
    %1887 = vmatprep.subr.mxu0 0.0
    %1888 = vmatpush2.msra.mxu0 0.0
    %1889 = vmatprep.subr.mxu0 0.0
    %1890 = vmatpush2.msra.mxu0 0.0
    %1891 = vmatprep.subr.mxu0 0.0
    %1892 = vmatpush2.msra.mxu0 0.0
    %1893 = vmatprep.subr.mxu0 0.0
    %1894 = vmatpush2.msra.mxu0 0.0
    %1895 = vmatprep.subr.mxu0 0.0
    %1896 = vmatpush2.msra.mxu0 0.0
    %1897 = vmatprep.subr.mxu0 0.0
    %1898 = vmatpush2.msra.mxu0 0.0
    %1899 = vmatprep.subr.mxu0 0.0
    %1900 = vmatpush2.msra.mxu0 0.0
    %1901 = vmatprep.subr.mxu0 0.0
    %1902 = vmatpush2.msra.mxu0 0.0
    %1903 = vmatprep.subr.mxu0 0.0
    %1904 = vmatpush2.msra.mxu0 0.0
    %1905 = vmatprep.subr.mxu0 0.0
    %1906 = vmatpush2.msra.mxu0 0.0
    %1907 = vmatprep.subr.mxu0 0.0
    %1908 = vmatpush2.msra.mxu0 0.0
    %1909 = vmatprep.subr.mxu0 0.0
    %1910 = vmatpush2.msra.mxu0 0.0
    %1911 = vmatprep.subr.mxu0 0.0
    %1912 = vmatpush2.msra.mxu0 0.0
    %1913 = vmatprep.subr.mxu0 0.0
    %1914 = vmatpush2.msra.mxu0 0.0
    %1915 = vmatprep.mubr.f32.mxu0 0.0
    %1916 = vmatmul.mubr.f32.gmra.mxu0 %v1829
    %v1917 = vpop.f32.mrf.mxu0
    %v1918 = vadd.f32 %v1850, %v1917
    %v1919 = vpop.f32.mrf.mxu0
    %1920 = vdwg.mxu0
    %vm1921 = vcmask 254976
    %1922 = vst.msk [vmem:[#allocation3] sm:$0x3] %vm1921, %v1918
    // Predicated region
    $region14: #{tpu_custom_call.1} parent=1 // pred_check
      _
    $region15: #{tpu_custom_call.1} parent=1 // pred_check_branch
      %1924 = sbr.rel (0) target = $region17
    $region16: #{tpu_custom_call.1} parent=1 // pred_region
      %s1926 = ssub.s32 32, 32
      %1927 = vsyncadd [#allocation4], %s1926
      %s1929 = sshll.u32 [#allocation3], 4
      %s1930 = int_to_ptr.vmem [resolvable:$true] %s1929
      %1932 = dma.vmem_to_hbm [thread:$0]  %s1930, 32, %s3, [#allocation4]
    $region17: #{tpu_custom_call.1} parent=1 // pred_fallthru
      _
    // Predicated region
    $region18: #{tpu_custom_call.1} parent=1 // pred_check
      _
    $region19: #{tpu_custom_call.1} parent=1 // pred_check_branch
      %1934 = sbr.rel (0) target = $region21
    $region20: #{tpu_custom_call.1} parent=1 // pred_region
      %1935 = dma.done [#allocation4], 32
    $region21: #{tpu_custom_call.1} parent=1 // pred_fallthru
      _
    %1936 = vsyncpa [#allocation4], 1

</llo_original>
